<compile_context>
chip_gen: v7x
topology: tpu7x:2x2x1
jax: 0.10.0
libtpu: 0.0.40
codegen_flags: <defaults>
</compile_context>

<pallas_src>
import functools

import jax
import jax.numpy as jnp
from jax.experimental import pallas as pl
from jax.experimental.pallas import tpu as pltpu

BN_EPS = 1e-5
# Whole working set is <1 MiB; 32 MiB keeps us far under every generation's VMEM.
VMEM_LIMIT = 32 * 1024 * 1024


# ------------------------------ fused kernel --------------------------------
def fused_forward_kernel(x_ref, wbig_ref, gamma_ref, beta_ref, sel_ref,
                         selt_ref, wh_ref, pred_ref, hpad_ref, *,
                         b_dim, h_dim, w_dim, c_dim, n_layers):
    """Full LIDC_I2L_atter forward for the whole batch, resident in VMEM.

    x_ref    : (B*H, W*C)        input, channels innermost on lanes (residual)
    wbig_ref : (L, 3*W*C, W*C)   block-tridiagonal folded conv weights
    gamma_ref: (L, 1, C)         BN gamma per layer
    beta_ref : (L, 1, C)         BN beta per layer
    sel_ref  : (W*C, C)          channel selector (tiled identity)
    selt_ref : (C, W*C)          its transpose (lane-expander)
    wh_ref   : (W*C, W)          folded 1x1-conv head weight
    pred_ref : (B, H, W)         sigmoid output
    hpad_ref : (B, H+2, W*C)     VMEM scratch, H-padded activations
    """
    bh = b_dim * h_dim
    wc = w_dim * c_dim
    inv_n = 1.0 / float(b_dim * h_dim * w_dim)

    x = x_ref[...]                                   # (B*H, W*C)
    sel = sel_ref[...]                               # (W*C, C)
    selt = selt_ref[...]                             # (C, W*C)

    # Zero the H-padded scratch once; its border rows stay zero for all layers.
    hpad_ref[...] = jnp.zeros(hpad_ref.shape, hpad_ref.dtype)

    h = x
    for li in range(n_layers):
        # ---- Conv3x3 (no bias): one folded MXU contraction -----------------
        hpad_ref[:, pl.ds(1, h_dim), :] = h.reshape(b_dim, h_dim, wc)
        slabs = [hpad_ref[:, pl.ds(ky, h_dim), :].reshape(bh, wc)
                 for ky in range(3)]
        xcol = jnp.concatenate(slabs, axis=1)        # (B*H, 3*W*C), VMEM-only
        # (keep f32 on the MXU; bf16 cast of xcol/wbig is the v6e/v7x option)
        y = jnp.dot(xcol, wbig_ref[li], preferred_element_type=jnp.float32)

        # ---- BatchNorm2d (train-mode batch stats) + affine + ReLU ----------
        ycat = jnp.concatenate([y, y * y], axis=0)                    # (2*B*H, W*C)
        ch = jnp.dot(ycat, sel, preferred_element_type=jnp.float32)   # (2*B*H, C)
        mean = jnp.sum(ch[:bh], axis=0, keepdims=True) * inv_n        # (1, C)
        var = jnp.sum(ch[bh:], axis=0, keepdims=True) * inv_n - mean * mean
        scale = gamma_ref[li] * jax.lax.rsqrt(var + BN_EPS)           # (1, C)
        shift = beta_ref[li] - mean * scale                           # (1, C)
        ss = jnp.concatenate([scale, shift], axis=0)                  # (2, C)
        ss_l = jnp.dot(ss, selt, preferred_element_type=jnp.float32)  # (2, W*C)
        h = jnp.maximum(y * ss_l[0:1, :] + ss_l[1:2, :], 0.0)

    # ---- head: residual add + 1x1 conv (no bias) + sigmoid -----------------
    s = jnp.dot(h + x, wh_ref[...], preferred_element_type=jnp.float32)  # (B*H, W)
    pred_ref[...] = jax.nn.sigmoid(s).reshape(b_dim, h_dim, w_dim)


# --------------------------------- wrapper ----------------------------------
def lidc_i2l_atter_forward(x_nchw, params):
    """x: (B, C, H, W) float32 -> pred: (B, 1, H, W) float32."""
    b_dim, c_dim, h_dim, w_dim = x_nchw.shape
    wc = w_dim * c_dim
    n_layers = len(params["convs"])

    # channels-last, lane-dense layout with batch folded into rows: (B*H, W*C)
    x_lanes = jnp.transpose(x_nchw, (0, 2, 3, 1)).reshape(b_dim * h_dim, wc)

    # channel selector: sel[w*C+c, c'] = 1 iff c == c'
    sel = jnp.tile(jnp.eye(c_dim, dtype=jnp.float32), (w_dim, 1))     # (W*C, C)
    selt = sel.T                                                      # (C, W*C)

    # head matrix (W*C, W): wh[w*C+c, w'] = wfc[c] iff w == w'
    eye_w = jnp.eye(w_dim, dtype=jnp.float32)
    wh = jnp.einsum("ab,c->acb", eye_w, params["wfc"]).reshape(wc, w_dim)

    # Block-tridiagonal folded conv weights (one (3*W*C, W*C) per layer):
    #   row (ky*W + w_in)*C + c_in, col w_out*C + c_out holds
    #   w_hwio[ky, kx, c_in, c_out] with kx = w_in - w_out + 1 (zero otherwise),
    # so the W-direction taps/boundary live in the weight; only H is zero-padded.
    shifts = jnp.stack([jnp.eye(w_dim, k=1 - kx, dtype=jnp.float32)
                        for kx in range(3)])                          # (3, W, W)
    wbig_all = jnp.stack([
        jnp.einsum("xab,yxio->yaibo", shifts,
                   w.reshape(3, 3, c_dim, c_dim)).reshape(3 * wc, wc)
        for (w, _, _) in params["convs"]])                            # (L, 3WC, WC)
    gamma_all = jnp.stack([g.reshape(1, c_dim) for (_, g, _) in params["convs"]])
    beta_all = jnp.stack([bt.reshape(1, c_dim) for (_, _, bt) in params["convs"]])

    kern = functools.partial(fused_forward_kernel, b_dim=b_dim, h_dim=h_dim,
                             w_dim=w_dim, c_dim=c_dim, n_layers=n_layers)
    pred = pl.pallas_call(
        kern,
        grid=(1,),
        in_specs=[
            pl.BlockSpec(x_lanes.shape, lambda i: (0, 0)),
            pl.BlockSpec(wbig_all.shape, lambda i: (0, 0, 0)),
            pl.BlockSpec(gamma_all.shape, lambda i: (0, 0, 0)),
            pl.BlockSpec(beta_all.shape, lambda i: (0, 0, 0)),
            pl.BlockSpec(sel.shape, lambda i: (0, 0)),
            pl.BlockSpec(selt.shape, lambda i: (0, 0)),
            pl.BlockSpec(wh.shape, lambda i: (0, 0)),
        ],
        out_specs=pl.BlockSpec((b_dim, h_dim, w_dim), lambda i: (0, 0, 0)),
        out_shape=jax.ShapeDtypeStruct((b_dim, h_dim, w_dim), jnp.float32),
        scratch_shapes=[pltpu.VMEM((b_dim, h_dim + 2, wc), jnp.float32)],
        compiler_params=pltpu.CompilerParams(
            dimension_semantics=("arbitrary",),
            vmem_limit_bytes=VMEM_LIMIT),
    )(x_lanes, wbig_all, gamma_all, beta_all, sel, selt, wh)
    return pred[:, None, :, :]


# -------------------------- parameter construction --------------------------
def init_params(key, in_dim):
    """Deterministic synthetic parameters matching the module's shapes."""
    ks = jax.random.split(key, 13)
    convs = []
    fan_in = in_dim * 9
    for i in range(4):  # 2 DoubleConv blocks x 2 conv layers each
        w = jax.random.normal(ks[3 * i], (3, 3, in_dim, in_dim),
                              dtype=jnp.float32) / jnp.sqrt(float(fan_in))
        gamma = 1.0 + 0.1 * jax.random.normal(ks[3 * i + 1], (in_dim,),
                                              dtype=jnp.float32)
        beta = 0.1 * jax.random.normal(ks[3 * i + 2], (in_dim,),
                                       dtype=jnp.float32)
        convs.append((w, gamma, beta))
    wfc = jax.random.normal(ks[12], (in_dim,),
                            dtype=jnp.float32) / jnp.sqrt(float(in_dim))
    return {"convs": convs, "wfc": wfc}


# ------------------------------ pure-JAX reference ---------------------------
def reference_forward(x_nchw, params):
    h = x_nchw
    for (w, gamma, beta) in params["convs"]:
        h = jax.lax.conv_general_dilated(
            h, w, window_strides=(1, 1), padding="SAME",
            dimension_numbers=("NCHW", "HWIO", "NCHW"))
        mean = h.mean(axis=(0, 2, 3), keepdims=True)
        var = ((h - mean) ** 2).mean(axis=(0, 2, 3), keepdims=True)
        h = (h - mean) * jax.lax.rsqrt(var + BN_EPS)
        h = h * gamma.reshape(1, -1, 1, 1) + beta.reshape(1, -1, 1, 1)
        h = jnp.maximum(h, 0.0)
    s = jnp.einsum("bchw,c->bhw", h + x_nchw, params["wfc"])
    return jax.nn.sigmoid(s)[:, None, :, :]


# ---------------------------------- main -------------------------------------
if __name__ == "__main__":
    B, C, H = 2, 4, 16
    key = jax.random.PRNGKey(0)
    kx, kp = jax.random.split(key)
    x = jax.random.normal(kx, (B, C, H, H), dtype=jnp.float32)
    params = init_params(kp, C)

    fwd = jax.jit(functools.partial(lidc_i2l_atter_forward, params=params))
    pred = fwd(x)
    jax.block_until_ready(pred)

    assert pred.shape == (B, 1, H, H), pred.shape

    ref = reference_forward(x, params)
    assert jnp.allclose(pred, ref, atol=2e-4, rtol=2e-4), (
        float(jnp.max(jnp.abs(pred - ref))))

    print("KERNEL_OK")
</pallas_src>

<mosaic_0001>
module attributes {stable_mosaic.version = 11 : i64} {
  func.func @fused_forward_kernel(%arg0: i32, %arg1: memref<32x64xf32, #tpu.memory_space<vmem>>, %arg2: memref<4x192x64xf32, #tpu.memory_space<vmem>>, %arg3: memref<4x1x4xf32, #tpu.memory_space<vmem>>, %arg4: memref<4x1x4xf32, #tpu.memory_space<vmem>>, %arg5: memref<64x4xf32, #tpu.memory_space<vmem>>, %arg6: memref<4x64xf32, #tpu.memory_space<vmem>>, %arg7: memref<64x16xf32, #tpu.memory_space<vmem>>, %arg8: memref<2x16x16xf32, #tpu.memory_space<vmem>>, %arg9: memref<2x18x64xf32, #tpu.memory_space<vmem>>) attributes {dimension_semantics = [#tpu.dimension_semantics<arbitrary>], iteration_bounds = array<i64: 1>, scalar_prefetch = 0 : i64, scratch_operands = 1 : i64, tpu.core_type = #tpu.core_type<tc>, window_params = [{pipeline_mode = #tpu.pipeline_mode<synchronous>, transform_indices = @transform_0, window_bounds = array<i64: 32, 64>}, {pipeline_mode = #tpu.pipeline_mode<synchronous>, transform_indices = @transform_1, window_bounds = array<i64: 4, 192, 64>}, {pipeline_mode = #tpu.pipeline_mode<synchronous>, transform_indices = @transform_2, window_bounds = array<i64: 4, 1, 4>}, {pipeline_mode = #tpu.pipeline_mode<synchronous>, transform_indices = @transform_3, window_bounds = array<i64: 4, 1, 4>}, {pipeline_mode = #tpu.pipeline_mode<synchronous>, transform_indices = @transform_4, window_bounds = array<i64: 64, 4>}, {pipeline_mode = #tpu.pipeline_mode<synchronous>, transform_indices = @transform_5, window_bounds = array<i64: 4, 64>}, {pipeline_mode = #tpu.pipeline_mode<synchronous>, transform_indices = @transform_6, window_bounds = array<i64: 64, 16>}, {pipeline_mode = #tpu.pipeline_mode<synchronous>, transform_indices = @transform_7, window_bounds = array<i64: 2, 16, 16>}]} {
    %c0 = arith.constant 0 : index
    %c0_0 = arith.constant 0 : index
    %0 = vector.load %arg1[%c0, %c0_0] : memref<32x64xf32, #tpu.memory_space<vmem>>, vector<32x64xf32>
    %c0_1 = arith.constant 0 : index
    %c0_2 = arith.constant 0 : index
    %1 = vector.load %arg5[%c0_1, %c0_2] : memref<64x4xf32, #tpu.memory_space<vmem>>, vector<64x4xf32>
    %c0_3 = arith.constant 0 : index
    %c0_4 = arith.constant 0 : index
    %2 = vector.load %arg6[%c0_3, %c0_4] : memref<4x64xf32, #tpu.memory_space<vmem>>, vector<4x64xf32>
    %cst = arith.constant 0.000000e+00 : f32
    %3 = vector.broadcast %cst : f32 to vector<2x18x64xf32>
    %c0_5 = arith.constant 0 : index
    %c0_6 = arith.constant 0 : index
    %c0_7 = arith.constant 0 : index
    %4 = vector.load %arg9[%c0_5, %c0_6, %c0_7] : memref<2x18x64xf32, #tpu.memory_space<vmem>>, vector<2x18x64xf32>
    tpu.vector_store %arg9[%c0_5, %c0_6, %c0_7], %3 {strides = array<i32>} : memref<2x18x64xf32, #tpu.memory_space<vmem>>, vector<2x18x64xf32>,
    %5 = vector.shape_cast %0 : vector<32x64xf32> to vector<2x16x64xf32>
    %c0_8 = arith.constant 0 : index
    %c1 = arith.constant 1 : index
    %c0_9 = arith.constant 0 : index
    %6 = vector.load %arg9[%c0_8, %c1, %c0_9] : memref<2x18x64xf32, #tpu.memory_space<vmem>>, vector<2x16x64xf32>
    tpu.vector_store %arg9[%c0_8, %c1, %c0_9], %5 {strides = array<i32>} : memref<2x18x64xf32, #tpu.memory_space<vmem>>, vector<2x16x64xf32>,
    %c0_10 = arith.constant 0 : index
    %c0_11 = arith.constant 0 : index
    %c0_12 = arith.constant 0 : index
    %7 = vector.load %arg9[%c0_10, %c0_11, %c0_12] : memref<2x18x64xf32, #tpu.memory_space<vmem>>, vector<2x16x64xf32>
    %8 = vector.shape_cast %7 : vector<2x16x64xf32> to vector<32x64xf32>
    %c0_13 = arith.constant 0 : index
    %c1_14 = arith.constant 1 : index
    %c0_15 = arith.constant 0 : index
    %9 = vector.load %arg9[%c0_13, %c1_14, %c0_15] : memref<2x18x64xf32, #tpu.memory_space<vmem>>, vector<2x16x64xf32>
    %10 = vector.shape_cast %9 : vector<2x16x64xf32> to vector<32x64xf32>
    %c0_16 = arith.constant 0 : index
    %c2 = arith.constant 2 : index
    %c0_17 = arith.constant 0 : index
    %11 = vector.load %arg9[%c0_16, %c2, %c0_17] : memref<2x18x64xf32, #tpu.memory_space<vmem>>, vector<2x16x64xf32>
    %12 = vector.shape_cast %11 : vector<2x16x64xf32> to vector<32x64xf32>
    %13 = tpu.concatenate %8, %10, %12 in 1 : vector<32x64xf32>, vector<32x64xf32>, vector<32x64xf32> -> vector<32x192xf32>
    %c0_18 = arith.constant 0 : index
    %c0_19 = arith.constant 0 : index
    %c0_20 = arith.constant 0 : index
    %14 = vector.load %arg2[%c0_18, %c0_19, %c0_20] : memref<4x192x64xf32, #tpu.memory_space<vmem>>, vector<1x192x64xf32>
    %15 = vector.shape_cast %14 : vector<1x192x64xf32> to vector<192x64xf32>
    %cst_21 = arith.constant dense<0.000000e+00> : vector<32x64xf32>
    %16 = tpu.matmul %13, %15, %cst_21 {dimension_numbers = #tpu.dot_dimension_numbers<[1], [0], [0], [1], [0, 0, 1, 1], [], []>} : vector<32x192xf32>, vector<192x64xf32>, vector<32x64xf32> -> vector<32x64xf32>
    %17 = arith.mulf %16, %16 : vector<32x64xf32>
    %18 = tpu.concatenate %16, %17 in 0 : vector<32x64xf32>, vector<32x64xf32> -> vector<64x64xf32>
    %cst_22 = arith.constant dense<0.000000e+00> : vector<64x4xf32>
    %19 = tpu.matmul %18, %1, %cst_22 {dimension_numbers = #tpu.dot_dimension_numbers<[1], [0], [0], [1], [0, 0, 1, 1], [], []>} : vector<64x64xf32>, vector<64x4xf32>, vector<64x4xf32> -> vector<64x4xf32>
    %20 = vector.extract_strided_slice %19 {offsets = [0, 0], sizes = [32, 4], strides = [1, 1]} : vector<64x4xf32> to vector<32x4xf32>
    %cst_23 = arith.constant dense<0.000000e+00> : vector<4xf32>
    %21 = vector.multi_reduction <add>, %20, %cst_23 [0] : vector<32x4xf32> to vector<4xf32>
    %22 = vector.shape_cast %21 : vector<4xf32> to vector<1x4xf32>
    %cst_24 = arith.constant 0.001953125 : f32
    %23 = vector.broadcast %cst_24 : f32 to vector<1x4xf32>
    %24 = arith.mulf %22, %23 : vector<1x4xf32>
    %25 = vector.extract_strided_slice %19 {offsets = [32, 0], sizes = [32, 4], strides = [1, 1]} : vector<64x4xf32> to vector<32x4xf32>
    %cst_25 = arith.constant dense<0.000000e+00> : vector<4xf32>
    %26 = vector.multi_reduction <add>, %25, %cst_25 [0] : vector<32x4xf32> to vector<4xf32>
    %27 = vector.shape_cast %26 : vector<4xf32> to vector<1x4xf32>
    %cst_26 = arith.constant 0.001953125 : f32
    %28 = vector.broadcast %cst_26 : f32 to vector<1x4xf32>
    %29 = arith.mulf %27, %28 : vector<1x4xf32>
    %30 = arith.mulf %24, %24 : vector<1x4xf32>
    %31 = arith.subf %29, %30 : vector<1x4xf32>
    %c0_27 = arith.constant 0 : index
    %c0_28 = arith.constant 0 : index
    %c0_29 = arith.constant 0 : index
    %32 = vector.load %arg3[%c0_27, %c0_28, %c0_29] : memref<4x1x4xf32, #tpu.memory_space<vmem>>, vector<1x1x4xf32>
    %33 = vector.shape_cast %32 : vector<1x1x4xf32> to vector<1x4xf32>
    %cst_30 = arith.constant 9.99999974E-6 : f32
    %34 = vector.broadcast %cst_30 : f32 to vector<1x4xf32>
    %35 = arith.addf %31, %34 : vector<1x4xf32>
    %36 = math.rsqrt %35 : vector<1x4xf32>
    %37 = arith.mulf %33, %36 : vector<1x4xf32>
    %c0_31 = arith.constant 0 : index
    %c0_32 = arith.constant 0 : index
    %c0_33 = arith.constant 0 : index
    %38 = vector.load %arg4[%c0_31, %c0_32, %c0_33] : memref<4x1x4xf32, #tpu.memory_space<vmem>>, vector<1x1x4xf32>
    %39 = vector.shape_cast %38 : vector<1x1x4xf32> to vector<1x4xf32>
    %40 = arith.mulf %24, %37 : vector<1x4xf32>
    %41 = arith.subf %39, %40 : vector<1x4xf32>
    %42 = tpu.concatenate %37, %41 in 0 : vector<1x4xf32>, vector<1x4xf32> -> vector<2x4xf32>
    %cst_34 = arith.constant dense<0.000000e+00> : vector<2x64xf32>
    %43 = tpu.matmul %42, %2, %cst_34 {dimension_numbers = #tpu.dot_dimension_numbers<[1], [0], [0], [1], [0, 0, 1, 1], [], []>} : vector<2x4xf32>, vector<4x64xf32>, vector<2x64xf32> -> vector<2x64xf32>
    %44 = vector.extract_strided_slice %43 {offsets = [0, 0], sizes = [1, 64], strides = [1, 1]} : vector<2x64xf32> to vector<1x64xf32>
    %45 = vector.broadcast %44 : vector<1x64xf32> to vector<32x64xf32>
    %46 = arith.mulf %16, %45 : vector<32x64xf32>
    %47 = vector.extract_strided_slice %43 {offsets = [1, 0], sizes = [1, 64], strides = [1, 1]} : vector<2x64xf32> to vector<1x64xf32>
    %48 = vector.broadcast %47 : vector<1x64xf32> to vector<32x64xf32>
    %49 = arith.addf %46, %48 : vector<32x64xf32>
    %cst_35 = arith.constant 0.000000e+00 : f32
    %50 = vector.broadcast %cst_35 : f32 to vector<32x64xf32>
    %51 = arith.maximumf %49, %50 : vector<32x64xf32>
    %52 = vector.shape_cast %51 : vector<32x64xf32> to vector<2x16x64xf32>
    %c0_36 = arith.constant 0 : index
    %c1_37 = arith.constant 1 : index
    %c0_38 = arith.constant 0 : index
    %53 = vector.load %arg9[%c0_36, %c1_37, %c0_38] : memref<2x18x64xf32, #tpu.memory_space<vmem>>, vector<2x16x64xf32>
    tpu.vector_store %arg9[%c0_36, %c1_37, %c0_38], %52 {strides = array<i32>} : memref<2x18x64xf32, #tpu.memory_space<vmem>>, vector<2x16x64xf32>,
    %c0_39 = arith.constant 0 : index
    %c0_40 = arith.constant 0 : index
    %c0_41 = arith.constant 0 : index
    %54 = vector.load %arg9[%c0_39, %c0_40, %c0_41] : memref<2x18x64xf32, #tpu.memory_space<vmem>>, vector<2x16x64xf32>
    %55 = vector.shape_cast %54 : vector<2x16x64xf32> to vector<32x64xf32>
    %c0_42 = arith.constant 0 : index
    %c1_43 = arith.constant 1 : index
    %c0_44 = arith.constant 0 : index
    %56 = vector.load %arg9[%c0_42, %c1_43, %c0_44] : memref<2x18x64xf32, #tpu.memory_space<vmem>>, vector<2x16x64xf32>
    %57 = vector.shape_cast %56 : vector<2x16x64xf32> to vector<32x64xf32>
    %c0_45 = arith.constant 0 : index
    %c2_46 = arith.constant 2 : index
    %c0_47 = arith.constant 0 : index
    %58 = vector.load %arg9[%c0_45, %c2_46, %c0_47] : memref<2x18x64xf32, #tpu.memory_space<vmem>>, vector<2x16x64xf32>
    %59 = vector.shape_cast %58 : vector<2x16x64xf32> to vector<32x64xf32>
    %60 = tpu.concatenate %55, %57, %59 in 1 : vector<32x64xf32>, vector<32x64xf32>, vector<32x64xf32> -> vector<32x192xf32>
    %c1_48 = arith.constant 1 : index
    %c0_49 = arith.constant 0 : index
    %c0_50 = arith.constant 0 : index
    %61 = vector.load %arg2[%c1_48, %c0_49, %c0_50] : memref<4x192x64xf32, #tpu.memory_space<vmem>>, vector<1x192x64xf32>
    %62 = vector.shape_cast %61 : vector<1x192x64xf32> to vector<192x64xf32>
    %cst_51 = arith.constant dense<0.000000e+00> : vector<32x64xf32>
    %63 = tpu.matmul %60, %62, %cst_51 {dimension_numbers = #tpu.dot_dimension_numbers<[1], [0], [0], [1], [0, 0, 1, 1], [], []>} : vector<32x192xf32>, vector<192x64xf32>, vector<32x64xf32> -> vector<32x64xf32>
    %64 = arith.mulf %63, %63 : vector<32x64xf32>
    %65 = tpu.concatenate %63, %64 in 0 : vector<32x64xf32>, vector<32x64xf32> -> vector<64x64xf32>
    %cst_52 = arith.constant dense<0.000000e+00> : vector<64x4xf32>
    %66 = tpu.matmul %65, %1, %cst_52 {dimension_numbers = #tpu.dot_dimension_numbers<[1], [0], [0], [1], [0, 0, 1, 1], [], []>} : vector<64x64xf32>, vector<64x4xf32>, vector<64x4xf32> -> vector<64x4xf32>
    %67 = vector.extract_strided_slice %66 {offsets = [0, 0], sizes = [32, 4], strides = [1, 1]} : vector<64x4xf32> to vector<32x4xf32>
    %cst_53 = arith.constant dense<0.000000e+00> : vector<4xf32>
    %68 = vector.multi_reduction <add>, %67, %cst_53 [0] : vector<32x4xf32> to vector<4xf32>
    %69 = vector.shape_cast %68 : vector<4xf32> to vector<1x4xf32>
    %cst_54 = arith.constant 0.001953125 : f32
    %70 = vector.broadcast %cst_54 : f32 to vector<1x4xf32>
    %71 = arith.mulf %69, %70 : vector<1x4xf32>
    %72 = vector.extract_strided_slice %66 {offsets = [32, 0], sizes = [32, 4], strides = [1, 1]} : vector<64x4xf32> to vector<32x4xf32>
    %cst_55 = arith.constant dense<0.000000e+00> : vector<4xf32>
    %73 = vector.multi_reduction <add>, %72, %cst_55 [0] : vector<32x4xf32> to vector<4xf32>
    %74 = vector.shape_cast %73 : vector<4xf32> to vector<1x4xf32>
    %cst_56 = arith.constant 0.001953125 : f32
    %75 = vector.broadcast %cst_56 : f32 to vector<1x4xf32>
    %76 = arith.mulf %74, %75 : vector<1x4xf32>
    %77 = arith.mulf %71, %71 : vector<1x4xf32>
    %78 = arith.subf %76, %77 : vector<1x4xf32>
    %c1_57 = arith.constant 1 : index
    %c0_58 = arith.constant 0 : index
    %c0_59 = arith.constant 0 : index
    %79 = vector.load %arg3[%c1_57, %c0_58, %c0_59] : memref<4x1x4xf32, #tpu.memory_space<vmem>>, vector<1x1x4xf32>
    %80 = vector.shape_cast %79 : vector<1x1x4xf32> to vector<1x4xf32>
    %cst_60 = arith.constant 9.99999974E-6 : f32
    %81 = vector.broadcast %cst_60 : f32 to vector<1x4xf32>
    %82 = arith.addf %78, %81 : vector<1x4xf32>
    %83 = math.rsqrt %82 : vector<1x4xf32>
    %84 = arith.mulf %80, %83 : vector<1x4xf32>
    %c1_61 = arith.constant 1 : index
    %c0_62 = arith.constant 0 : index
    %c0_63 = arith.constant 0 : index
    %85 = vector.load %arg4[%c1_61, %c0_62, %c0_63] : memref<4x1x4xf32, #tpu.memory_space<vmem>>, vector<1x1x4xf32>
    %86 = vector.shape_cast %85 : vector<1x1x4xf32> to vector<1x4xf32>
    %87 = arith.mulf %71, %84 : vector<1x4xf32>
    %88 = arith.subf %86, %87 : vector<1x4xf32>
    %89 = tpu.concatenate %84, %88 in 0 : vector<1x4xf32>, vector<1x4xf32> -> vector<2x4xf32>
    %cst_64 = arith.constant dense<0.000000e+00> : vector<2x64xf32>
    %90 = tpu.matmul %89, %2, %cst_64 {dimension_numbers = #tpu.dot_dimension_numbers<[1], [0], [0], [1], [0, 0, 1, 1], [], []>} : vector<2x4xf32>, vector<4x64xf32>, vector<2x64xf32> -> vector<2x64xf32>
    %91 = vector.extract_strided_slice %90 {offsets = [0, 0], sizes = [1, 64], strides = [1, 1]} : vector<2x64xf32> to vector<1x64xf32>
    %92 = vector.broadcast %91 : vector<1x64xf32> to vector<32x64xf32>
    %93 = arith.mulf %63, %92 : vector<32x64xf32>
    %94 = vector.extract_strided_slice %90 {offsets = [1, 0], sizes = [1, 64], strides = [1, 1]} : vector<2x64xf32> to vector<1x64xf32>
    %95 = vector.broadcast %94 : vector<1x64xf32> to vector<32x64xf32>
    %96 = arith.addf %93, %95 : vector<32x64xf32>
    %cst_65 = arith.constant 0.000000e+00 : f32
    %97 = vector.broadcast %cst_65 : f32 to vector<32x64xf32>
    %98 = arith.maximumf %96, %97 : vector<32x64xf32>
    %99 = vector.shape_cast %98 : vector<32x64xf32> to vector<2x16x64xf32>
    %c0_66 = arith.constant 0 : index
    %c1_67 = arith.constant 1 : index
    %c0_68 = arith.constant 0 : index
    %100 = vector.load %arg9[%c0_66, %c1_67, %c0_68] : memref<2x18x64xf32, #tpu.memory_space<vmem>>, vector<2x16x64xf32>
    tpu.vector_store %arg9[%c0_66, %c1_67, %c0_68], %99 {strides = array<i32>} : memref<2x18x64xf32, #tpu.memory_space<vmem>>, vector<2x16x64xf32>,
    %c0_69 = arith.constant 0 : index
    %c0_70 = arith.constant 0 : index
    %c0_71 = arith.constant 0 : index
    %101 = vector.load %arg9[%c0_69, %c0_70, %c0_71] : memref<2x18x64xf32, #tpu.memory_space<vmem>>, vector<2x16x64xf32>
    %102 = vector.shape_cast %101 : vector<2x16x64xf32> to vector<32x64xf32>
    %c0_72 = arith.constant 0 : index
    %c1_73 = arith.constant 1 : index
    %c0_74 = arith.constant 0 : index
    %103 = vector.load %arg9[%c0_72, %c1_73, %c0_74] : memref<2x18x64xf32, #tpu.memory_space<vmem>>, vector<2x16x64xf32>
    %104 = vector.shape_cast %103 : vector<2x16x64xf32> to vector<32x64xf32>
    %c0_75 = arith.constant 0 : index
    %c2_76 = arith.constant 2 : index
    %c0_77 = arith.constant 0 : index
    %105 = vector.load %arg9[%c0_75, %c2_76, %c0_77] : memref<2x18x64xf32, #tpu.memory_space<vmem>>, vector<2x16x64xf32>
    %106 = vector.shape_cast %105 : vector<2x16x64xf32> to vector<32x64xf32>
    %107 = tpu.concatenate %102, %104, %106 in 1 : vector<32x64xf32>, vector<32x64xf32>, vector<32x64xf32> -> vector<32x192xf32>
    %c2_78 = arith.constant 2 : index
    %c0_79 = arith.constant 0 : index
    %c0_80 = arith.constant 0 : index
    %108 = vector.load %arg2[%c2_78, %c0_79, %c0_80] : memref<4x192x64xf32, #tpu.memory_space<vmem>>, vector<1x192x64xf32>
    %109 = vector.shape_cast %108 : vector<1x192x64xf32> to vector<192x64xf32>
    %cst_81 = arith.constant dense<0.000000e+00> : vector<32x64xf32>
    %110 = tpu.matmul %107, %109, %cst_81 {dimension_numbers = #tpu.dot_dimension_numbers<[1], [0], [0], [1], [0, 0, 1, 1], [], []>} : vector<32x192xf32>, vector<192x64xf32>, vector<32x64xf32> -> vector<32x64xf32>
    %111 = arith.mulf %110, %110 : vector<32x64xf32>
    %112 = tpu.concatenate %110, %111 in 0 : vector<32x64xf32>, vector<32x64xf32> -> vector<64x64xf32>
    %cst_82 = arith.constant dense<0.000000e+00> : vector<64x4xf32>
    %113 = tpu.matmul %112, %1, %cst_82 {dimension_numbers = #tpu.dot_dimension_numbers<[1], [0], [0], [1], [0, 0, 1, 1], [], []>} : vector<64x64xf32>, vector<64x4xf32>, vector<64x4xf32> -> vector<64x4xf32>
    %114 = vector.extract_strided_slice %113 {offsets = [0, 0], sizes = [32, 4], strides = [1, 1]} : vector<64x4xf32> to vector<32x4xf32>
    %cst_83 = arith.constant dense<0.000000e+00> : vector<4xf32>
    %115 = vector.multi_reduction <add>, %114, %cst_83 [0] : vector<32x4xf32> to vector<4xf32>
    %116 = vector.shape_cast %115 : vector<4xf32> to vector<1x4xf32>
    %cst_84 = arith.constant 0.001953125 : f32
    %117 = vector.broadcast %cst_84 : f32 to vector<1x4xf32>
    %118 = arith.mulf %116, %117 : vector<1x4xf32>
    %119 = vector.extract_strided_slice %113 {offsets = [32, 0], sizes = [32, 4], strides = [1, 1]} : vector<64x4xf32> to vector<32x4xf32>
    %cst_85 = arith.constant dense<0.000000e+00> : vector<4xf32>
    %120 = vector.multi_reduction <add>, %119, %cst_85 [0] : vector<32x4xf32> to vector<4xf32>
    %121 = vector.shape_cast %120 : vector<4xf32> to vector<1x4xf32>
    %cst_86 = arith.constant 0.001953125 : f32
    %122 = vector.broadcast %cst_86 : f32 to vector<1x4xf32>
    %123 = arith.mulf %121, %122 : vector<1x4xf32>
    %124 = arith.mulf %118, %118 : vector<1x4xf32>
    %125 = arith.subf %123, %124 : vector<1x4xf32>
    %c2_87 = arith.constant 2 : index
    %c0_88 = arith.constant 0 : index
    %c0_89 = arith.constant 0 : index
    %126 = vector.load %arg3[%c2_87, %c0_88, %c0_89] : memref<4x1x4xf32, #tpu.memory_space<vmem>>, vector<1x1x4xf32>
    %127 = vector.shape_cast %126 : vector<1x1x4xf32> to vector<1x4xf32>
    %cst_90 = arith.constant 9.99999974E-6 : f32
    %128 = vector.broadcast %cst_90 : f32 to vector<1x4xf32>
    %129 = arith.addf %125, %128 : vector<1x4xf32>
    %130 = math.rsqrt %129 : vector<1x4xf32>
    %131 = arith.mulf %127, %130 : vector<1x4xf32>
    %c2_91 = arith.constant 2 : index
    %c0_92 = arith.constant 0 : index
    %c0_93 = arith.constant 0 : index
    %132 = vector.load %arg4[%c2_91, %c0_92, %c0_93] : memref<4x1x4xf32, #tpu.memory_space<vmem>>, vector<1x1x4xf32>
    %133 = vector.shape_cast %132 : vector<1x1x4xf32> to vector<1x4xf32>
    %134 = arith.mulf %118, %131 : vector<1x4xf32>
    %135 = arith.subf %133, %134 : vector<1x4xf32>
    %136 = tpu.concatenate %131, %135 in 0 : vector<1x4xf32>, vector<1x4xf32> -> vector<2x4xf32>
    %cst_94 = arith.constant dense<0.000000e+00> : vector<2x64xf32>
    %137 = tpu.matmul %136, %2, %cst_94 {dimension_numbers = #tpu.dot_dimension_numbers<[1], [0], [0], [1], [0, 0, 1, 1], [], []>} : vector<2x4xf32>, vector<4x64xf32>, vector<2x64xf32> -> vector<2x64xf32>
    %138 = vector.extract_strided_slice %137 {offsets = [0, 0], sizes = [1, 64], strides = [1, 1]} : vector<2x64xf32> to vector<1x64xf32>
    %139 = vector.broadcast %138 : vector<1x64xf32> to vector<32x64xf32>
    %140 = arith.mulf %110, %139 : vector<32x64xf32>
    %141 = vector.extract_strided_slice %137 {offsets = [1, 0], sizes = [1, 64], strides = [1, 1]} : vector<2x64xf32> to vector<1x64xf32>
    %142 = vector.broadcast %141 : vector<1x64xf32> to vector<32x64xf32>
    %143 = arith.addf %140, %142 : vector<32x64xf32>
    %cst_95 = arith.constant 0.000000e+00 : f32
    %144 = vector.broadcast %cst_95 : f32 to vector<32x64xf32>
    %145 = arith.maximumf %143, %144 : vector<32x64xf32>
    %146 = vector.shape_cast %145 : vector<32x64xf32> to vector<2x16x64xf32>
    %c0_96 = arith.constant 0 : index
    %c1_97 = arith.constant 1 : index
    %c0_98 = arith.constant 0 : index
    %147 = vector.load %arg9[%c0_96, %c1_97, %c0_98] : memref<2x18x64xf32, #tpu.memory_space<vmem>>, vector<2x16x64xf32>
    tpu.vector_store %arg9[%c0_96, %c1_97, %c0_98], %146 {strides = array<i32>} : memref<2x18x64xf32, #tpu.memory_space<vmem>>, vector<2x16x64xf32>,
    %c0_99 = arith.constant 0 : index
    %c0_100 = arith.constant 0 : index
    %c0_101 = arith.constant 0 : index
    %148 = vector.load %arg9[%c0_99, %c0_100, %c0_101] : memref<2x18x64xf32, #tpu.memory_space<vmem>>, vector<2x16x64xf32>
    %149 = vector.shape_cast %148 : vector<2x16x64xf32> to vector<32x64xf32>
    %c0_102 = arith.constant 0 : index
    %c1_103 = arith.constant 1 : index
    %c0_104 = arith.constant 0 : index
    %150 = vector.load %arg9[%c0_102, %c1_103, %c0_104] : memref<2x18x64xf32, #tpu.memory_space<vmem>>, vector<2x16x64xf32>
    %151 = vector.shape_cast %150 : vector<2x16x64xf32> to vector<32x64xf32>
    %c0_105 = arith.constant 0 : index
    %c2_106 = arith.constant 2 : index
    %c0_107 = arith.constant 0 : index
    %152 = vector.load %arg9[%c0_105, %c2_106, %c0_107] : memref<2x18x64xf32, #tpu.memory_space<vmem>>, vector<2x16x64xf32>
    %153 = vector.shape_cast %152 : vector<2x16x64xf32> to vector<32x64xf32>
    %154 = tpu.concatenate %149, %151, %153 in 1 : vector<32x64xf32>, vector<32x64xf32>, vector<32x64xf32> -> vector<32x192xf32>
    %c3 = arith.constant 3 : index
    %c0_108 = arith.constant 0 : index
    %c0_109 = arith.constant 0 : index
    %155 = vector.load %arg2[%c3, %c0_108, %c0_109] : memref<4x192x64xf32, #tpu.memory_space<vmem>>, vector<1x192x64xf32>
    %156 = vector.shape_cast %155 : vector<1x192x64xf32> to vector<192x64xf32>
    %cst_110 = arith.constant dense<0.000000e+00> : vector<32x64xf32>
    %157 = tpu.matmul %154, %156, %cst_110 {dimension_numbers = #tpu.dot_dimension_numbers<[1], [0], [0], [1], [0, 0, 1, 1], [], []>} : vector<32x192xf32>, vector<192x64xf32>, vector<32x64xf32> -> vector<32x64xf32>
    %158 = arith.mulf %157, %157 : vector<32x64xf32>
    %159 = tpu.concatenate %157, %158 in 0 : vector<32x64xf32>, vector<32x64xf32> -> vector<64x64xf32>
    %cst_111 = arith.constant dense<0.000000e+00> : vector<64x4xf32>
    %160 = tpu.matmul %159, %1, %cst_111 {dimension_numbers = #tpu.dot_dimension_numbers<[1], [0], [0], [1], [0, 0, 1, 1], [], []>} : vector<64x64xf32>, vector<64x4xf32>, vector<64x4xf32> -> vector<64x4xf32>
    %161 = vector.extract_strided_slice %160 {offsets = [0, 0], sizes = [32, 4], strides = [1, 1]} : vector<64x4xf32> to vector<32x4xf32>
    %cst_112 = arith.constant dense<0.000000e+00> : vector<4xf32>
    %162 = vector.multi_reduction <add>, %161, %cst_112 [0] : vector<32x4xf32> to vector<4xf32>
    %163 = vector.shape_cast %162 : vector<4xf32> to vector<1x4xf32>
    %cst_113 = arith.constant 0.001953125 : f32
    %164 = vector.broadcast %cst_113 : f32 to vector<1x4xf32>
    %165 = arith.mulf %163, %164 : vector<1x4xf32>
    %166 = vector.extract_strided_slice %160 {offsets = [32, 0], sizes = [32, 4], strides = [1, 1]} : vector<64x4xf32> to vector<32x4xf32>
    %cst_114 = arith.constant dense<0.000000e+00> : vector<4xf32>
    %167 = vector.multi_reduction <add>, %166, %cst_114 [0] : vector<32x4xf32> to vector<4xf32>
    %168 = vector.shape_cast %167 : vector<4xf32> to vector<1x4xf32>
    %cst_115 = arith.constant 0.001953125 : f32
    %169 = vector.broadcast %cst_115 : f32 to vector<1x4xf32>
    %170 = arith.mulf %168, %169 : vector<1x4xf32>
    %171 = arith.mulf %165, %165 : vector<1x4xf32>
    %172 = arith.subf %170, %171 : vector<1x4xf32>
    %c3_116 = arith.constant 3 : index
    %c0_117 = arith.constant 0 : index
    %c0_118 = arith.constant 0 : index
    %173 = vector.load %arg3[%c3_116, %c0_117, %c0_118] : memref<4x1x4xf32, #tpu.memory_space<vmem>>, vector<1x1x4xf32>
    %174 = vector.shape_cast %173 : vector<1x1x4xf32> to vector<1x4xf32>
    %cst_119 = arith.constant 9.99999974E-6 : f32
    %175 = vector.broadcast %cst_119 : f32 to vector<1x4xf32>
    %176 = arith.addf %172, %175 : vector<1x4xf32>
    %177 = math.rsqrt %176 : vector<1x4xf32>
    %178 = arith.mulf %174, %177 : vector<1x4xf32>
    %c3_120 = arith.constant 3 : index
    %c0_121 = arith.constant 0 : index
    %c0_122 = arith.constant 0 : index
    %179 = vector.load %arg4[%c3_120, %c0_121, %c0_122] : memref<4x1x4xf32, #tpu.memory_space<vmem>>, vector<1x1x4xf32>
    %180 = vector.shape_cast %179 : vector<1x1x4xf32> to vector<1x4xf32>
    %181 = arith.mulf %165, %178 : vector<1x4xf32>
    %182 = arith.subf %180, %181 : vector<1x4xf32>
    %183 = tpu.concatenate %178, %182 in 0 : vector<1x4xf32>, vector<1x4xf32> -> vector<2x4xf32>
    %cst_123 = arith.constant dense<0.000000e+00> : vector<2x64xf32>
    %184 = tpu.matmul %183, %2, %cst_123 {dimension_numbers = #tpu.dot_dimension_numbers<[1], [0], [0], [1], [0, 0, 1, 1], [], []>} : vector<2x4xf32>, vector<4x64xf32>, vector<2x64xf32> -> vector<2x64xf32>
    %185 = vector.extract_strided_slice %184 {offsets = [0, 0], sizes = [1, 64], strides = [1, 1]} : vector<2x64xf32> to vector<1x64xf32>
    %186 = vector.broadcast %185 : vector<1x64xf32> to vector<32x64xf32>
    %187 = arith.mulf %157, %186 : vector<32x64xf32>
    %188 = vector.extract_strided_slice %184 {offsets = [1, 0], sizes = [1, 64], strides = [1, 1]} : vector<2x64xf32> to vector<1x64xf32>
    %189 = vector.broadcast %188 : vector<1x64xf32> to vector<32x64xf32>
    %190 = arith.addf %187, %189 : vector<32x64xf32>
    %cst_124 = arith.constant 0.000000e+00 : f32
    %191 = vector.broadcast %cst_124 : f32 to vector<32x64xf32>
    %192 = arith.maximumf %190, %191 : vector<32x64xf32>
    %193 = arith.addf %192, %0 : vector<32x64xf32>
    %c0_125 = arith.constant 0 : index
    %c0_126 = arith.constant 0 : index
    %194 = vector.load %arg7[%c0_125, %c0_126] : memref<64x16xf32, #tpu.memory_space<vmem>>, vector<64x16xf32>
    %cst_127 = arith.constant dense<0.000000e+00> : vector<32x16xf32>
    %195 = tpu.matmul %193, %194, %cst_127 {dimension_numbers = #tpu.dot_dimension_numbers<[1], [0], [0], [1], [0, 0, 1, 1], [], []>} : vector<32x64xf32>, vector<64x16xf32>, vector<32x16xf32> -> vector<32x16xf32>
    %196 = arith.negf %195 : vector<32x16xf32>
    %197 = math.exp %196 : vector<32x16xf32>
    %cst_128 = arith.constant 1.000000e+00 : f32
    %198 = vector.broadcast %cst_128 : f32 to vector<32x16xf32>
    %199 = arith.addf %198, %197 : vector<32x16xf32>
    %200 = arith.divf %198, %199 : vector<32x16xf32>
    %201 = vector.shape_cast %200 : vector<32x16xf32> to vector<2x16x16xf32>
    %c0_129 = arith.constant 0 : index
    %c0_130 = arith.constant 0 : index
    %c0_131 = arith.constant 0 : index
    %202 = vector.load %arg8[%c0_129, %c0_130, %c0_131] : memref<2x16x16xf32, #tpu.memory_space<vmem>>, vector<2x16x16xf32>
    tpu.vector_store %arg8[%c0_129, %c0_130, %c0_131], %201 {strides = array<i32>} : memref<2x16x16xf32, #tpu.memory_space<vmem>>, vector<2x16x16xf32>,
    return
  }
  func.func @transform_0(%arg0: i32) -> (i32, i32) {
    %c0_i32 = arith.constant 0 : i32
    %c0_i32_0 = arith.constant 0 : i32
    %c0_i32_1 = arith.constant 0 : i32
    return %c0_i32, %c0_i32_0 : i32, i32
  }
  func.func @transform_1(%arg0: i32) -> (i32, i32, i32) {
    %c0_i32 = arith.constant 0 : i32
    %c0_i32_0 = arith.constant 0 : i32
    %c0_i32_1 = arith.constant 0 : i32
    %c0_i32_2 = arith.constant 0 : i32
    return %c0_i32, %c0_i32_0, %c0_i32_1 : i32, i32, i32
  }
  func.func @transform_2(%arg0: i32) -> (i32, i32, i32) {
    %c0_i32 = arith.constant 0 : i32
    %c0_i32_0 = arith.constant 0 : i32
    %c0_i32_1 = arith.constant 0 : i32
    %c0_i32_2 = arith.constant 0 : i32
    return %c0_i32, %c0_i32_0, %c0_i32_1 : i32, i32, i32
  }
  func.func @transform_3(%arg0: i32) -> (i32, i32, i32) {
    %c0_i32 = arith.constant 0 : i32
    %c0_i32_0 = arith.constant 0 : i32
    %c0_i32_1 = arith.constant 0 : i32
    %c0_i32_2 = arith.constant 0 : i32
    return %c0_i32, %c0_i32_0, %c0_i32_1 : i32, i32, i32
  }
  func.func @transform_4(%arg0: i32) -> (i32, i32) {
    %c0_i32 = arith.constant 0 : i32
    %c0_i32_0 = arith.constant 0 : i32
    %c0_i32_1 = arith.constant 0 : i32
    return %c0_i32, %c0_i32_0 : i32, i32
  }
  func.func @transform_5(%arg0: i32) -> (i32, i32) {
    %c0_i32 = arith.constant 0 : i32
    %c0_i32_0 = arith.constant 0 : i32
    %c0_i32_1 = arith.constant 0 : i32
    return %c0_i32, %c0_i32_0 : i32, i32
  }
  func.func @transform_6(%arg0: i32) -> (i32, i32) {
    %c0_i32 = arith.constant 0 : i32
    %c0_i32_0 = arith.constant 0 : i32
    %c0_i32_1 = arith.constant 0 : i32
    return %c0_i32, %c0_i32_0 : i32, i32
  }
  func.func @transform_7(%arg0: i32) -> (i32, i32, i32) {
    %c0_i32 = arith.constant 0 : i32
    %c0_i32_0 = arith.constant 0 : i32
    %c0_i32_1 = arith.constant 0 : i32
    %c0_i32_2 = arith.constant 0 : i32
    return %c0_i32, %c0_i32_0, %c0_i32_1 : i32, i32, i32
  }
}

</mosaic_0001>

<llo_original>
// kernel: tile.9
$region0: #{tile.9}
  %s0 = inlined_call_operand.vmem [shape: f32[16,4,4], index: 0, kind: input, shape index: {}]
  %s1 = inlined_call_operand.vmem [shape: f32[64,4], index: 1, kind: output, shape index: {}]
  $region1: #{tile.9} parent=0
    #allocation0 [shape = 'u8[4096]{0}', space=vmem, size = 0x1000, scoped, tag = 'scoped mem for output reshape']
    %s2 = smov 3
    %v3 = vld [vmem:[%s0] ss:$16 sm:%s2]
    %s4 = smov 12
    %v5 = vld [vmem:[%s0] ss:$16 sm:%s4]
    %vm6 = vcmask 1043458
    %v7 = vsel %vm6, %v5, %v3
    %vm8 = vcmask 31744
    %9 = vst.msk [vmem:[#allocation0] sm:$0xf] %vm8, %v7
    %s10 = scalar_lea.vmem %s0, 15
    %s11 = smov 3
    %v12 = vld [vmem:[%s10] ss:$16 sm:%s11]
    %s13 = scalar_lea.vmem %s0, 15
    %s14 = smov 12
    %v15 = vld [vmem:[%s13] ss:$16 sm:%s14]
    %vm16 = vcmask 1043458
    %v17 = vsel %vm16, %v15, %v12
    %18 = vrot.lane.b32.xlu0 %v17, 60
    %v19 = vpop.permute.xlu0 %18
    %vm20 = vcmask 523744
    %21 = vst.msk [vmem:[#allocation0] sm:$0xf] %vm20, %v19
    %s22 = scalar_lea.vmem %s0, 14
    %s23 = smov 3
    %v24 = vld [vmem:[%s22] ss:$16 sm:%s23]
    %s25 = scalar_lea.vmem %s0, 14
    %s26 = smov 12
    %v27 = vld [vmem:[%s25] ss:$16 sm:%s26]
    %vm28 = vcmask 1043458
    %v29 = vsel %vm28, %v27, %v24
    %30 = vrot.lane.b32.xlu0 %v29, 56
    %v31 = vpop.permute.xlu0 %30
    %vm32 = vcmask 490944
    %33 = vst.msk [vmem:[#allocation0] sm:$0xf] %vm32, %v31
    %s34 = scalar_lea.vmem %s0, 13
    %s35 = smov 3
    %v36 = vld [vmem:[%s34] ss:$16 sm:%s35]
    %s37 = scalar_lea.vmem %s0, 13
    %s38 = smov 12
    %v39 = vld [vmem:[%s37] ss:$16 sm:%s38]
    %vm40 = vcmask 1043458
    %v41 = vsel %vm40, %v39, %v36
    %42 = vrot.lane.b32.xlu0 %v41, 52
    %v43 = vpop.permute.xlu0 %42
    %vm44 = vcmask 458144
    %45 = vst.msk [vmem:[#allocation0] sm:$0xf] %vm44, %v43
    %s46 = scalar_lea.vmem %s0, 12
    %s47 = smov 3
    %v48 = vld [vmem:[%s46] ss:$16 sm:%s47]
    %s49 = scalar_lea.vmem %s0, 12
    %s50 = smov 12
    %v51 = vld [vmem:[%s49] ss:$16 sm:%s50]
    %vm52 = vcmask 1043458
    %v53 = vsel %vm52, %v51, %v48
    %54 = vrot.lane.b32.xlu0 %v53, 48
    %v55 = vpop.permute.xlu0 %54
    %vm56 = vcmask 425344
    %57 = vst.msk [vmem:[#allocation0] sm:$0xf] %vm56, %v55
    %s58 = scalar_lea.vmem %s0, 11
    %s59 = smov 3
    %v60 = vld [vmem:[%s58] ss:$16 sm:%s59]
    %s61 = scalar_lea.vmem %s0, 11
    %s62 = smov 12
    %v63 = vld [vmem:[%s61] ss:$16 sm:%s62]
    %vm64 = vcmask 1043458
    %v65 = vsel %vm64, %v63, %v60
    %66 = vrot.lane.b32.xlu0 %v65, 44
    %v67 = vpop.permute.xlu0 %66
    %vm68 = vcmask 392544
    %69 = vst.msk [vmem:[#allocation0] sm:$0xf] %vm68, %v67
    %s70 = scalar_lea.vmem %s0, 10
    %s71 = smov 3
    %v72 = vld [vmem:[%s70] ss:$16 sm:%s71]
    %s73 = scalar_lea.vmem %s0, 10
    %s74 = smov 12
    %v75 = vld [vmem:[%s73] ss:$16 sm:%s74]
    %vm76 = vcmask 1043458
    %v77 = vsel %vm76, %v75, %v72
    %78 = vrot.lane.b32.xlu0 %v77, 40
    %v79 = vpop.permute.xlu0 %78
    %vm80 = vcmask 359744
    %81 = vst.msk [vmem:[#allocation0] sm:$0xf] %vm80, %v79
    %s82 = scalar_lea.vmem %s0, 9
    %s83 = smov 3
    %v84 = vld [vmem:[%s82] ss:$16 sm:%s83]
    %s85 = scalar_lea.vmem %s0, 9
    %s86 = smov 12
    %v87 = vld [vmem:[%s85] ss:$16 sm:%s86]
    %vm88 = vcmask 1043458
    %v89 = vsel %vm88, %v87, %v84
    %90 = vrot.lane.b32.xlu0 %v89, 36
    %v91 = vpop.permute.xlu0 %90
    %vm92 = vcmask 326944
    %93 = vst.msk [vmem:[#allocation0] sm:$0xf] %vm92, %v91
    %s94 = scalar_lea.vmem %s0, 8
    %s95 = smov 3
    %v96 = vld [vmem:[%s94] ss:$16 sm:%s95]
    %s97 = scalar_lea.vmem %s0, 8
    %s98 = smov 12
    %v99 = vld [vmem:[%s97] ss:$16 sm:%s98]
    %vm100 = vcmask 1043458
    %v101 = vsel %vm100, %v99, %v96
    %102 = vrot.lane.b32.xlu0 %v101, 32
    %v103 = vpop.permute.xlu0 %102
    %vm104 = vcmask 294144
    %105 = vst.msk [vmem:[#allocation0] sm:$0xf] %vm104, %v103
    %s106 = scalar_lea.vmem %s0, 7
    %s107 = smov 3
    %v108 = vld [vmem:[%s106] ss:$16 sm:%s107]
    %s109 = scalar_lea.vmem %s0, 7
    %s110 = smov 12
    %v111 = vld [vmem:[%s109] ss:$16 sm:%s110]
    %vm112 = vcmask 1043458
    %v113 = vsel %vm112, %v111, %v108
    %114 = vrot.lane.b32.xlu0 %v113, 28
    %v115 = vpop.permute.xlu0 %114
    %vm116 = vcmask 261344
    %117 = vst.msk [vmem:[#allocation0] sm:$0xf] %vm116, %v115
    %s118 = scalar_lea.vmem %s0, 6
    %s119 = smov 3
    %v120 = vld [vmem:[%s118] ss:$16 sm:%s119]
    %s121 = scalar_lea.vmem %s0, 6
    %s122 = smov 12
    %v123 = vld [vmem:[%s121] ss:$16 sm:%s122]
    %vm124 = vcmask 1043458
    %v125 = vsel %vm124, %v123, %v120
    %126 = vrot.lane.b32.xlu0 %v125, 24
    %v127 = vpop.permute.xlu0 %126
    %vm128 = vcmask 228544
    %129 = vst.msk [vmem:[#allocation0] sm:$0xf] %vm128, %v127
    %s130 = scalar_lea.vmem %s0, 5
    %s131 = smov 3
    %v132 = vld [vmem:[%s130] ss:$16 sm:%s131]
    %s133 = scalar_lea.vmem %s0, 5
    %s134 = smov 12
    %v135 = vld [vmem:[%s133] ss:$16 sm:%s134]
    %vm136 = vcmask 1043458
    %v137 = vsel %vm136, %v135, %v132
    %138 = vrot.lane.b32.xlu0 %v137, 20
    %v139 = vpop.permute.xlu0 %138
    %vm140 = vcmask 195744
    %141 = vst.msk [vmem:[#allocation0] sm:$0xf] %vm140, %v139
    %s142 = scalar_lea.vmem %s0, 4
    %s143 = smov 3
    %v144 = vld [vmem:[%s142] ss:$16 sm:%s143]
    %s145 = scalar_lea.vmem %s0, 4
    %s146 = smov 12
    %v147 = vld [vmem:[%s145] ss:$16 sm:%s146]
    %vm148 = vcmask 1043458
    %v149 = vsel %vm148, %v147, %v144
    %150 = vrot.lane.b32.xlu0 %v149, 16
    %v151 = vpop.permute.xlu0 %150
    %vm152 = vcmask 162944
    %153 = vst.msk [vmem:[#allocation0] sm:$0xf] %vm152, %v151
    %s154 = scalar_lea.vmem %s0, 3
    %s155 = smov 3
    %v156 = vld [vmem:[%s154] ss:$16 sm:%s155]
    %s157 = scalar_lea.vmem %s0, 3
    %s158 = smov 12
    %v159 = vld [vmem:[%s157] ss:$16 sm:%s158]
    %vm160 = vcmask 1043458
    %v161 = vsel %vm160, %v159, %v156
    %162 = vrot.lane.b32.xlu0 %v161, 12
    %v163 = vpop.permute.xlu0 %162
    %vm164 = vcmask 130144
    %165 = vst.msk [vmem:[#allocation0] sm:$0xf] %vm164, %v163
    %s166 = scalar_lea.vmem %s0, 2
    %s167 = smov 3
    %v168 = vld [vmem:[%s166] ss:$16 sm:%s167]
    %s169 = scalar_lea.vmem %s0, 2
    %s170 = smov 12
    %v171 = vld [vmem:[%s169] ss:$16 sm:%s170]
    %vm172 = vcmask 1043458
    %v173 = vsel %vm172, %v171, %v168
    %174 = vrot.lane.b32.xlu0 %v173, 8
    %v175 = vpop.permute.xlu0 %174
    %vm176 = vcmask 97344
    %177 = vst.msk [vmem:[#allocation0] sm:$0xf] %vm176, %v175
    %s178 = scalar_lea.vmem %s0, 1
    %s179 = smov 3
    %v180 = vld [vmem:[%s178] ss:$16 sm:%s179]
    %s181 = scalar_lea.vmem %s0, 1
    %s182 = smov 12
    %v183 = vld [vmem:[%s181] ss:$16 sm:%s182]
    %vm184 = vcmask 1043458
    %v185 = vsel %vm184, %v183, %v180
    %186 = vrot.lane.b32.xlu0 %v185, 4
    %v187 = vpop.permute.xlu0 %186
    %vm188 = vcmask 64544
    %189 = vst.msk [vmem:[#allocation0] sm:$0xf] %vm188, %v187
    %s191 = sshllo.u32 0, 4
    %v193 = vld [vmem:[#allocation0] sm:%s191]
    %s194 = sshllo.u32 0, 4
    %195 = vst [vmem:[%s1] sm:%s194] %v193

// kernel: lidc_i2l_atter_forward.1
$region0: #{lidc_i2l_atter_forward.1}
  #allocation0 [shape = 'u32[]', space=smem, size = 0x4, offset = 0x4, fixed_abs, tag = 'smem constant byte address 0x4 - core index']
  #allocation1 [shape = 'u32[144,128]{1,0:T(1,128)}', space=vmem, size = 0x12000, scoped, tag = 'internal scratch']
  #allocation2 [shape = 'f32[2,18,64]{2,1,0:T(8,128)}', space=vmem, size = 0x6000, scoped, tag = 'scratch operand']
  %s0 = inlined_call_operand.vmem [shape: f32[32,64], index: 0, kind: input, shape index: {}]
  %s1 = inlined_call_operand.vmem [shape: f32[4,192,64], index: 1, kind: input, shape index: {}]
  %s2 = inlined_call_operand.vmem [shape: f32[4,1,4], index: 2, kind: input, shape index: {}]
  %s3 = inlined_call_operand.vmem [shape: f32[4,1,4], index: 3, kind: input, shape index: {}]
  %s4 = inlined_call_operand.vmem [shape: f32[64,4], index: 4, kind: input, shape index: {}]
  %s5 = inlined_call_operand.vmem [shape: f32[4,64], index: 5, kind: input, shape index: {}]
  %s6 = inlined_call_operand.vmem [shape: f32[64,16], index: 6, kind: input, shape index: {}]
  %s7 = inlined_call_operand.hbm [shape: f32[2,16,16], index: 7, kind: output, shape index: {}]
  %s8 = sld [smem:[#allocation0]]
  $region38: #{lidc_i2l_atter_forward.1} parent=0
    _
  %s10 = ssub.s32 1, %s8
  %s11 = scalar_select 0, %s10, %s8
  $region1: #{lidc_i2l_atter_forward.1} parent=0
    #allocation3 [shape = 'u8[16384]{0}', space=vmem, size = 0x4000, scoped, tag = 'output window, operand 0, single buffered']
    #allocation4 [shape = 's32[1]{0}', space=sflag, size = 0x4, scoped, tag = 'scoped memory for lidc_i2l_atter_forward.1']
    %12 = vsyncpa [#allocation4], 0
    // Predicated region
    $region2: #{lidc_i2l_atter_forward.1} parent=1 // pred_check
      _
    $region3: #{lidc_i2l_atter_forward.1} parent=1 // pred_check_branch
      %14 = sbr.rel (0) target = $region5
    $region4: #{lidc_i2l_atter_forward.1} parent=1 // pred_region
      _
    $region5: #{lidc_i2l_atter_forward.1} parent=1 // pred_fallthru
      _
    // Predicated region
    $region6: #{lidc_i2l_atter_forward.1} parent=1 // pred_check
      _
    $region7: #{lidc_i2l_atter_forward.1} parent=1 // pred_check_branch
      %16 = sbr.rel (0) target = $region9
    $region8: #{lidc_i2l_atter_forward.1} parent=1 // pred_region
      _
    $region9: #{lidc_i2l_atter_forward.1} parent=1 // pred_fallthru
      _
    // Predicated region
    $region10: #{lidc_i2l_atter_forward.1} parent=1 // pred_check
      _
    $region11: #{lidc_i2l_atter_forward.1} parent=1 // pred_check_branch
      %18 = sbr.rel (0) target = $region13
    $region12: #{lidc_i2l_atter_forward.1} parent=1 // pred_region
      _
    $region13: #{lidc_i2l_atter_forward.1} parent=1 // pred_fallthru
      _
    // Predicated region
    $region14: #{lidc_i2l_atter_forward.1} parent=1 // pred_check
      _
    $region15: #{lidc_i2l_atter_forward.1} parent=1 // pred_check_branch
      %20 = sbr.rel (0) target = $region17
    $region16: #{lidc_i2l_atter_forward.1} parent=1 // pred_region
      _
    $region17: #{lidc_i2l_atter_forward.1} parent=1 // pred_fallthru
      _
    // Predicated region
    $region18: #{lidc_i2l_atter_forward.1} parent=1 // pred_check
      _
    $region19: #{lidc_i2l_atter_forward.1} parent=1 // pred_check_branch
      %22 = sbr.rel (0) target = $region21
    $region20: #{lidc_i2l_atter_forward.1} parent=1 // pred_region
      _
    $region21: #{lidc_i2l_atter_forward.1} parent=1 // pred_fallthru
      _
    // Predicated region
    $region22: #{lidc_i2l_atter_forward.1} parent=1 // pred_check
      _
    $region23: #{lidc_i2l_atter_forward.1} parent=1 // pred_check_branch
      %24 = sbr.rel (0) target = $region25
    $region24: #{lidc_i2l_atter_forward.1} parent=1 // pred_region
      _
    $region25: #{lidc_i2l_atter_forward.1} parent=1 // pred_fallthru
      _
    // Predicated region
    $region26: #{lidc_i2l_atter_forward.1} parent=1 // pred_check
      _
    $region27: #{lidc_i2l_atter_forward.1} parent=1 // pred_check_branch
      %26 = sbr.rel (0) target = $region29
    $region28: #{lidc_i2l_atter_forward.1} parent=1 // pred_region
      _
    $region29: #{lidc_i2l_atter_forward.1} parent=1 // pred_fallthru
      _
    %v27 = vld [vmem:[%s0] sm:$0xff]
    %v28 = vld [vmem:[%s0 + $0x8] sm:$0xff]
    %v29 = vld [vmem:[%s0 + $0x10] sm:$0xff]
    %v30 = vld [vmem:[%s0 + $0x18] sm:$0xff]
    %v31 = vld [vmem:[%s4] sm:$0xff]
    %v32 = vld [vmem:[%s4 + $0x8] sm:$0xff]
    %v33 = vld [vmem:[%s4 + $0x10] sm:$0xff]
    %v34 = vld [vmem:[%s4 + $0x18] sm:$0xff]
    %v35 = vld [vmem:[%s4 + $0x20] sm:$0xff]
    %v36 = vld [vmem:[%s4 + $0x28] sm:$0xff]
    %v37 = vld [vmem:[%s4 + $0x30] sm:$0xff]
    %v38 = vld [vmem:[%s4 + $0x38] sm:$0xff]
    %v39 = vld [vmem:[%s5] sm:$0xf]
    %vm40 = vcmask 523264
    %41 = vst.msk [vmem:[#allocation2] sm:$0xff] %vm40, 0.0
    %42 = vst.msk [vmem:[#allocation2 + $0x8] sm:$0xff] %vm40, 0.0
    %vm43 = vcmask 517120
    %44 = vst.msk [vmem:[#allocation2 + $0x10] sm:$0x3] %vm43, 0.0
    %45 = vst.msk [vmem:[#allocation2 + $0x18] sm:$0xff] %vm40, 0.0
    %46 = vst.msk [vmem:[#allocation2 + $0x20] sm:$0xff] %vm40, 0.0
    %47 = vst.msk [vmem:[#allocation2 + $0x28] sm:$0x3] %vm43, 0.0
    %48 = vst.msk [vmem:[#allocation2 + $0x1] sm:$0xff] %vm40, %v27
    %49 = vst.msk [vmem:[#allocation2 + $0x9] sm:$0xff] %vm40, %v28
    %50 = vst.msk [vmem:[#allocation2 + $0x19] sm:$0xff] %vm40, %v29
    %51 = vst.msk [vmem:[#allocation2 + $0x21] sm:$0xff] %vm40, %v30
    %v52 = vld [vmem:[#allocation2] sm:$0xff]
    %v53 = vld [vmem:[#allocation2 + $0x8] sm:$0xff]
    %v54 = vld [vmem:[#allocation2 + $0x18] sm:$0xff]
    %v55 = vld [vmem:[#allocation2 + $0x20] sm:$0xff]
    %v56 = vld [vmem:[#allocation2 + $0x1] sm:$0xff]
    %v57 = vld [vmem:[#allocation2 + $0x9] sm:$0xff]
    %v58 = vld [vmem:[#allocation2 + $0x19] sm:$0xff]
    %v59 = vld [vmem:[#allocation2 + $0x21] sm:$0xff]
    %v60 = vld [vmem:[#allocation2 + $0x2] sm:$0xff]
    %v61 = vld [vmem:[#allocation2 + $0xa] sm:$0xff]
    %v62 = vld [vmem:[#allocation2 + $0x1a] sm:$0xff]
    %v63 = vld [vmem:[#allocation2 + $0x22] sm:$0xff]
    %68 = vrot.lane.b32.xlu0 %v56, 64
    %v69 = vpop.permute.xlu0 %68
    %70 = vrot.lane.b32.xlu0 %v57, 64
    %v71 = vpop.permute.xlu0 %70
    %72 = vrot.lane.b32.xlu0 %v58, 64
    %v73 = vpop.permute.xlu0 %72
    %74 = vrot.lane.b32.xlu0 %v59, 64
    %v75 = vpop.permute.xlu0 %74
    %v80 = vsel %vm40, %v52, %v69
    %v81 = vsel %vm40, %v53, %v71
    %v82 = vsel %vm40, %v54, %v73
    %v83 = vsel %vm40, %v55, %v75
    %v84 = vld [vmem:[%s1] sm:$0xff]
    %v85 = vld [vmem:[%s1 + $0x8] sm:$0xff]
    %v86 = vld [vmem:[%s1 + $0x10] sm:$0xff]
    %v87 = vld [vmem:[%s1 + $0x18] sm:$0xff]
    %v88 = vld [vmem:[%s1 + $0x20] sm:$0xff]
    %v89 = vld [vmem:[%s1 + $0x28] sm:$0xff]
    %v90 = vld [vmem:[%s1 + $0x30] sm:$0xff]
    %v91 = vld [vmem:[%s1 + $0x38] sm:$0xff]
    %v92 = vld [vmem:[%s1 + $0x40] sm:$0xff]
    %v93 = vld [vmem:[%s1 + $0x48] sm:$0xff]
    %v94 = vld [vmem:[%s1 + $0x50] sm:$0xff]
    %v95 = vld [vmem:[%s1 + $0x58] sm:$0xff]
    %v96 = vld [vmem:[%s1 + $0x60] sm:$0xff]
    %v97 = vld [vmem:[%s1 + $0x68] sm:$0xff]
    %v98 = vld [vmem:[%s1 + $0x70] sm:$0xff]
    %v99 = vld [vmem:[%s1 + $0x78] sm:$0xff]
    %v100 = vld [vmem:[%s1 + $0x80] sm:$0xff]
    %v101 = vld [vmem:[%s1 + $0x88] sm:$0xff]
    %v102 = vld [vmem:[%s1 + $0x90] sm:$0xff]
    %v103 = vld [vmem:[%s1 + $0x98] sm:$0xff]
    %v104 = vld [vmem:[%s1 + $0xa0] sm:$0xff]
    %v105 = vld [vmem:[%s1 + $0xa8] sm:$0xff]
    %v106 = vld [vmem:[%s1 + $0xb0] sm:$0xff]
    %v107 = vld [vmem:[%s1 + $0xb8] sm:$0xff]
    %v109 = vsel %vm40, %v60, 0
    %v112 = vsel %vm40, %v61, 0
    %v115 = vsel %vm40, %v62, 0
    %v118 = vsel %vm40, %v63, 0
    %120 = vmatprep.subr.mxu0 0.0
    %121 = vmatpush1.msra.mxu0 %v84
    %122 = vmatprep.subr.mxu0 0.0
    %123 = vmatpush1.msra.mxu0 %v85
    %124 = vmatprep.subr.mxu0 0.0
    %125 = vmatpush1.msra.mxu0 %v86
    %126 = vmatprep.subr.mxu0 0.0
    %127 = vmatpush1.msra.mxu0 %v87
    %128 = vmatprep.subr.mxu0 0.0
    %129 = vmatpush1.msra.mxu0 %v88
    %130 = vmatprep.subr.mxu0 0.0
    %131 = vmatpush1.msra.mxu0 %v89
    %132 = vmatprep.subr.mxu0 0.0
    %133 = vmatpush1.msra.mxu0 %v90
    %134 = vmatprep.subr.mxu0 0.0
    %135 = vmatpush1.msra.mxu0 %v91
    %136 = vmatprep.subr.mxu0 0.0
    %137 = vmatpush1.msra.mxu0 %v92
    %138 = vmatprep.subr.mxu0 0.0
    %139 = vmatpush1.msra.mxu0 %v93
    %140 = vmatprep.subr.mxu0 0.0
    %141 = vmatpush1.msra.mxu0 %v94
    %142 = vmatprep.subr.mxu0 0.0
    %143 = vmatpush1.msra.mxu0 %v95
    %144 = vmatprep.subr.mxu0 0.0
    %145 = vmatpush1.msra.mxu0 %v96
    %146 = vmatprep.subr.mxu0 0.0
    %147 = vmatpush1.msra.mxu0 %v97
    %148 = vmatprep.subr.mxu0 0.0
    %149 = vmatpush1.msra.mxu0 %v98
    %150 = vmatprep.subr.mxu0 0.0
    %151 = vmatpush1.msra.mxu0 %v99
    %152 = vmatprep.subr.mxu0 0.0
    %153 = vmatpush1.msra.mxu0 %v100
    %154 = vmatprep.subr.mxu0 0.0
    %155 = vmatpush1.msra.mxu0 %v101
    %156 = vmatprep.subr.mxu0 0.0
    %157 = vmatpush1.msra.mxu0 %v102
    %158 = vmatprep.subr.mxu0 0.0
    %159 = vmatpush1.msra.mxu0 %v103
    %160 = vmatprep.subr.mxu0 0.0
    %161 = vmatpush1.msra.mxu0 %v104
    %162 = vmatprep.subr.mxu0 0.0
    %163 = vmatpush1.msra.mxu0 %v105
    %164 = vmatprep.subr.mxu0 0.0
    %165 = vmatpush1.msra.mxu0 %v106
    %166 = vmatprep.subr.mxu0 0.0
    %167 = vmatpush1.msra.mxu0 %v107
    %168 = vmatprep.subr.mxu0 0.0
    %169 = vmatpush1.msra.mxu0 0.0
    %170 = vmatprep.subr.mxu0 0.0
    %171 = vmatpush1.msra.mxu0 0.0
    %172 = vmatprep.subr.mxu0 0.0
    %173 = vmatpush1.msra.mxu0 0.0
    %174 = vmatprep.subr.mxu0 0.0
    %175 = vmatpush1.msra.mxu0 0.0
    %176 = vmatprep.subr.mxu0 0.0
    %177 = vmatpush1.msra.mxu0 0.0
    %178 = vmatprep.subr.mxu0 0.0
    %179 = vmatpush1.msra.mxu0 0.0
    %180 = vmatprep.subr.mxu0 0.0
    %181 = vmatpush1.msra.mxu0 0.0
    %182 = vmatprep.subr.mxu0 0.0
    %183 = vmatpush1.msra.mxu0 0.0
    %184 = vmatprep.mubr.f32.mxu0 %v109
    %185 = vmatmul.mubr.f32.gmra.mrb[0].mxu0 %v80
    %v186 = vpop.f32.mrb[0].mxu0
    %v187 = vadd.f32 0.0, %v186
    %v188 = vpop.f32.mrb[0].mxu0
    %189 = vmatprep.mubr.f32.mxu0 %v112
    %190 = vmatmul.mubr.f32.gmra.mrb[0].mxu0 %v81
    %v191 = vpop.f32.mrb[0].mxu0
    %v192 = vadd.f32 0.0, %v191
    %v193 = vpop.f32.mrb[0].mxu0
    %194 = vmatprep.mubr.f32.mxu0 %v115
    %195 = vmatmul.mubr.f32.gmra.mrb[0].mxu0 %v82
    %v196 = vpop.f32.mrb[0].mxu0
    %v197 = vadd.f32 0.0, %v196
    %v198 = vpop.f32.mrb[0].mxu0
    %199 = vmatprep.mubr.f32.mxu0 %v118
    %200 = vmatmul.mubr.f32.gmra.mrb[0].mxu0 %v83
    %v201 = vpop.f32.mrb[0].mxu0
    %v202 = vadd.f32 0.0, %v201
    %v203 = vpop.f32.mrb[0].mxu0
    %204 = vdwg.mxu0
    %v205 = vmul.f32 %v187, %v187
    %v206 = vmul.f32 %v192, %v192
    %v207 = vmul.f32 %v197, %v197
    %v208 = vmul.f32 %v202, %v202
    %v210 = vsel %vm40, %v187, 0
    %v213 = vsel %vm40, %v192, 0
    %v216 = vsel %vm40, %v197, 0
    %v219 = vsel %vm40, %v202, 0
    %v222 = vsel %vm40, %v205, 0
    %v225 = vsel %vm40, %v206, 0
    %v228 = vsel %vm40, %v207, 0
    %v231 = vsel %vm40, %v208, 0
    %233 = vmatprep.subr.mxu0 0.0
    %234 = vmatpush1.msra.mxu0 %v31
    %235 = vmatprep.subr.mxu0 0.0
    %236 = vmatpush1.msra.mxu0 %v32
    %237 = vmatprep.subr.mxu0 0.0
    %238 = vmatpush1.msra.mxu0 %v33
    %239 = vmatprep.subr.mxu0 0.0
    %240 = vmatpush1.msra.mxu0 %v34
    %241 = vmatprep.subr.mxu0 0.0
    %242 = vmatpush1.msra.mxu0 %v35
    %243 = vmatprep.subr.mxu0 0.0
    %244 = vmatpush1.msra.mxu0 %v36
    %245 = vmatprep.subr.mxu0 0.0
    %246 = vmatpush1.msra.mxu0 %v37
    %247 = vmatprep.subr.mxu0 0.0
    %248 = vmatpush1.msra.mxu0 %v38
    %249 = vmatprep.subr.mxu0 0.0
    %250 = vmatpush1.msra.mxu0 0.0
    %251 = vmatprep.subr.mxu0 0.0
    %252 = vmatpush1.msra.mxu0 0.0
    %253 = vmatprep.subr.mxu0 0.0
    %254 = vmatpush1.msra.mxu0 0.0
    %255 = vmatprep.subr.mxu0 0.0
    %256 = vmatpush1.msra.mxu0 0.0
    %257 = vmatprep.subr.mxu0 0.0
    %258 = vmatpush1.msra.mxu0 0.0
    %259 = vmatprep.subr.mxu0 0.0
    %260 = vmatpush1.msra.mxu0 0.0
    %261 = vmatprep.subr.mxu0 0.0
    %262 = vmatpush1.msra.mxu0 0.0
    %263 = vmatprep.subr.mxu0 0.0
    %264 = vmatpush1.msra.mxu0 0.0
    %265 = vmatprep.subr.mxu0 0.0
    %266 = vmatpush1.msra.mxu0 0.0
    %267 = vmatprep.subr.mxu0 0.0
    %268 = vmatpush1.msra.mxu0 0.0
    %269 = vmatprep.subr.mxu0 0.0
    %270 = vmatpush1.msra.mxu0 0.0
    %271 = vmatprep.subr.mxu0 0.0
    %272 = vmatpush1.msra.mxu0 0.0
    %273 = vmatprep.subr.mxu0 0.0
    %274 = vmatpush1.msra.mxu0 0.0
    %275 = vmatprep.subr.mxu0 0.0
    %276 = vmatpush1.msra.mxu0 0.0
    %277 = vmatprep.subr.mxu0 0.0
    %278 = vmatpush1.msra.mxu0 0.0
    %279 = vmatprep.subr.mxu0 0.0
    %280 = vmatpush1.msra.mxu0 0.0
    %281 = vmatprep.subr.mxu0 0.0
    %282 = vmatpush1.msra.mxu0 0.0
    %283 = vmatprep.subr.mxu0 0.0
    %284 = vmatpush1.msra.mxu0 0.0
    %285 = vmatprep.subr.mxu0 0.0
    %286 = vmatpush1.msra.mxu0 0.0
    %287 = vmatprep.subr.mxu0 0.0
    %288 = vmatpush1.msra.mxu0 0.0
    %289 = vmatprep.subr.mxu0 0.0
    %290 = vmatpush1.msra.mxu0 0.0
    %291 = vmatprep.subr.mxu0 0.0
    %292 = vmatpush1.msra.mxu0 0.0
    %293 = vmatprep.subr.mxu0 0.0
    %294 = vmatpush1.msra.mxu0 0.0
    %295 = vmatprep.subr.mxu0 0.0
    %296 = vmatpush1.msra.mxu0 0.0
    %297 = vmatprep.mubr.f32.mxu0 0.0
    %298 = vmatmul.mubr.f32.gmra.mrb[0].mxu0 %v210
    %v299 = vpop.f32.mrb[0].mxu0
    %v300 = vadd.f32 0.0, %v299
    %v301 = vpop.f32.mrb[0].mxu0
    %302 = vmatprep.mubr.f32.mxu0 0.0
    %303 = vmatmul.mubr.f32.gmra.mrb[0].mxu0 %v213
    %v304 = vpop.f32.mrb[0].mxu0
    %v305 = vadd.f32 0.0, %v304
    %v306 = vpop.f32.mrb[0].mxu0
    %307 = vmatprep.mubr.f32.mxu0 0.0
    %308 = vmatmul.mubr.f32.gmra.mrb[0].mxu0 %v216
    %v309 = vpop.f32.mrb[0].mxu0
    %v310 = vadd.f32 0.0, %v309
    %v311 = vpop.f32.mrb[0].mxu0
    %312 = vmatprep.mubr.f32.mxu0 0.0
    %313 = vmatmul.mubr.f32.gmra.mrb[0].mxu0 %v219
    %v314 = vpop.f32.mrb[0].mxu0
    %v315 = vadd.f32 0.0, %v314
    %v316 = vpop.f32.mrb[0].mxu0
    %317 = vmatprep.mubr.f32.mxu0 0.0
    %318 = vmatmul.mubr.f32.gmra.mrb[0].mxu0 %v222
    %v319 = vpop.f32.mrb[0].mxu0
    %v320 = vadd.f32 0.0, %v319
    %v321 = vpop.f32.mrb[0].mxu0
    %322 = vmatprep.mubr.f32.mxu0 0.0
    %323 = vmatmul.mubr.f32.gmra.mrb[0].mxu0 %v225
    %v324 = vpop.f32.mrb[0].mxu0
    %v325 = vadd.f32 0.0, %v324
    %v326 = vpop.f32.mrb[0].mxu0
    %327 = vmatprep.mubr.f32.mxu0 0.0
    %328 = vmatmul.mubr.f32.gmra.mrb[0].mxu0 %v228
    %v329 = vpop.f32.mrb[0].mxu0
    %v330 = vadd.f32 0.0, %v329
    %v331 = vpop.f32.mrb[0].mxu0
    %332 = vmatprep.mubr.f32.mxu0 0.0
    %333 = vmatmul.mubr.f32.gmra.mrb[0].mxu0 %v231
    %v334 = vpop.f32.mrb[0].mxu0
    %v335 = vadd.f32 0.0, %v334
    %v336 = vpop.f32.mrb[0].mxu0
    %337 = vdwg.mxu0
    %vm338 = vcmask 31744
    %v339 = vsel %vm338, %v300, 0.0
    %v340 = vsel %vm338, %v305, 0.0
    %v341 = vadd.f32 %v339, %v340
    %v342 = vsel %vm338, %v310, 0.0
    %v343 = vadd.f32 %v341, %v342
    %v344 = vsel %vm338, %v315, 0.0
    %v345 = vadd.f32 %v343, %v344
    %v346 = vrot.slane %v345, 4
    %v347 = vadd.f32 %v345, %v346
    %v348 = vrot.slane %v347, 2
    %v349 = vadd.f32 %v347, %v348
    %v350 = vrot.slane %v349, 1
    %v351 = vadd.f32 %v349, %v350
    %v352 = vmul.f32 %v351, 0.001953125
    %v353 = vsel %vm338, %v320, 0.0
    %v354 = vsel %vm338, %v325, 0.0
    %v355 = vadd.f32 %v353, %v354
    %v356 = vsel %vm338, %v330, 0.0
    %v357 = vadd.f32 %v355, %v356
    %v358 = vsel %vm338, %v335, 0.0
    %v359 = vadd.f32 %v357, %v358
    %v360 = vrot.slane %v359, 4
    %v361 = vadd.f32 %v359, %v360
    %v362 = vrot.slane %v361, 2
    %v363 = vadd.f32 %v361, %v362
    %v364 = vrot.slane %v363, 1
    %v365 = vadd.f32 %v363, %v364
    %v366 = vmul.f32 %v365, 0.001953125
    %v367 = vmul.f32 %v352, %v352
    %v368 = vsub.f32 %v366, %v367
    %v369 = vld [vmem:[%s2] sm:$0x1]
    %v370 = vadd.f32 %v368, 1e-05
    %v371 = vrsqrt.pop %v370
    %v372 = vmul.f32 %v369, %v371
    %v373 = vld [vmem:[%s3] sm:$0x1]
    %v374 = vmul.f32 %v352, %v372
    %v375 = vsub.f32 %v373, %v374
    %v377 = vlaneseq
    %v378 = vshrl.u32 %v377, 7
    %v379 = vsub.s32 0, %v378
    %v380 = vrot.slane %v375, %v379
    %vm382 = vcmask 1040384
    %v383 = vsel %vm382, %v372, %v380
    %v385 = vsel %vm338, %v383, 0
    %vm387 = vcmask 1043456
    %v389 = vsel %vm387, %v39, 0
    %391 = vmatprep.subr.mxu0 0.0
    %392 = vmatpush1.msra.mxu0 %v389
    %393 = vmatprep.subr.mxu0 0.0
    %394 = vmatpush1.msra.mxu0 0.0
    %395 = vmatprep.subr.mxu0 0.0
    %396 = vmatpush1.msra.mxu0 0.0
    %397 = vmatprep.subr.mxu0 0.0
    %398 = vmatpush1.msra.mxu0 0.0
    %399 = vmatprep.subr.mxu0 0.0
    %400 = vmatpush1.msra.mxu0 0.0
    %401 = vmatprep.subr.mxu0 0.0
    %402 = vmatpush1.msra.mxu0 0.0
    %403 = vmatprep.subr.mxu0 0.0
    %404 = vmatpush1.msra.mxu0 0.0
    %405 = vmatprep.subr.mxu0 0.0
    %406 = vmatpush1.msra.mxu0 0.0
    %407 = vmatprep.subr.mxu0 0.0
    %408 = vmatpush1.msra.mxu0 0.0
    %409 = vmatprep.subr.mxu0 0.0
    %410 = vmatpush1.msra.mxu0 0.0
    %411 = vmatprep.subr.mxu0 0.0
    %412 = vmatpush1.msra.mxu0 0.0
    %413 = vmatprep.subr.mxu0 0.0
    %414 = vmatpush1.msra.mxu0 0.0
    %415 = vmatprep.subr.mxu0 0.0
    %416 = vmatpush1.msra.mxu0 0.0
    %417 = vmatprep.subr.mxu0 0.0
    %418 = vmatpush1.msra.mxu0 0.0
    %419 = vmatprep.subr.mxu0 0.0
    %420 = vmatpush1.msra.mxu0 0.0
    %421 = vmatprep.subr.mxu0 0.0
    %422 = vmatpush1.msra.mxu0 0.0
    %423 = vmatprep.subr.mxu0 0.0
    %424 = vmatpush1.msra.mxu0 0.0
    %425 = vmatprep.subr.mxu0 0.0
    %426 = vmatpush1.msra.mxu0 0.0
    %427 = vmatprep.subr.mxu0 0.0
    %428 = vmatpush1.msra.mxu0 0.0
    %429 = vmatprep.subr.mxu0 0.0
    %430 = vmatpush1.msra.mxu0 0.0
    %431 = vmatprep.subr.mxu0 0.0
    %432 = vmatpush1.msra.mxu0 0.0
    %433 = vmatprep.subr.mxu0 0.0
    %434 = vmatpush1.msra.mxu0 0.0
    %435 = vmatprep.subr.mxu0 0.0
    %436 = vmatpush1.msra.mxu0 0.0
    %437 = vmatprep.subr.mxu0 0.0
    %438 = vmatpush1.msra.mxu0 0.0
    %439 = vmatprep.subr.mxu0 0.0
    %440 = vmatpush1.msra.mxu0 0.0
    %441 = vmatprep.subr.mxu0 0.0
    %442 = vmatpush1.msra.mxu0 0.0
    %443 = vmatprep.subr.mxu0 0.0
    %444 = vmatpush1.msra.mxu0 0.0
    %445 = vmatprep.subr.mxu0 0.0
    %446 = vmatpush1.msra.mxu0 0.0
    %447 = vmatprep.subr.mxu0 0.0
    %448 = vmatpush1.msra.mxu0 0.0
    %449 = vmatprep.subr.mxu0 0.0
    %450 = vmatpush1.msra.mxu0 0.0
    %451 = vmatprep.subr.mxu0 0.0
    %452 = vmatpush1.msra.mxu0 0.0
    %453 = vmatprep.subr.mxu0 0.0
    %454 = vmatpush1.msra.mxu0 0.0
    %455 = vmatprep.mubr.f32.mxu0 0.0
    %456 = vmatmul.mubr.f32.gmra.mrb[0].mxu0 %v385
    %v457 = vpop.f32.mrb[0].mxu0
    %v458 = vadd.f32 0.0, %v457
    %v459 = vpop.f32.mrb[0].mxu0
    %460 = vdwg.mxu0
    %v461 = vlaneseq
    %v462 = vshrl.u32 %v461, 7
    %v463 = vsub.s32 0, %v462
    %v464 = vrot.slane %v458, %v463
    %v465 = vmul.f32 %v187, %v464
    %v466 = vmul.f32 %v192, %v464
    %v467 = vmul.f32 %v197, %v464
    %v468 = vmul.f32 %v202, %v464
    %v469 = vlaneseq
    %v470 = vshrl.u32 %v469, 7
    %v471 = vsub.s32 1, %v470
    %v472 = vrot.slane %v458, %v471
    %v473 = vadd.f32 %v465, %v472
    %v474 = vadd.f32 %v466, %v472
    %v475 = vadd.f32 %v467, %v472
    %v476 = vadd.f32 %v468, %v472
    %v477 = vmax.f32 %v473, 0.0
    %v478 = vmax.f32 %v474, 0.0
    %v479 = vmax.f32 %v475, 0.0
    %v480 = vmax.f32 %v476, 0.0
    %481 = vst.msk [vmem:[#allocation2 + $0x1] sm:$0xff] %vm40, %v477
    %482 = vst.msk [vmem:[#allocation2 + $0x9] sm:$0xff] %vm40, %v478
    %483 = vst.msk [vmem:[#allocation2 + $0x19] sm:$0xff] %vm40, %v479
    %484 = vst.msk [vmem:[#allocation2 + $0x21] sm:$0xff] %vm40, %v480
    %v485 = vld [vmem:[#allocation2] sm:$0xff]
    %v486 = vld [vmem:[#allocation2 + $0x8] sm:$0xff]
    %v487 = vld [vmem:[#allocation2 + $0x18] sm:$0xff]
    %v488 = vld [vmem:[#allocation2 + $0x20] sm:$0xff]
    %v489 = vld [vmem:[#allocation2 + $0x1] sm:$0xff]
    %v490 = vld [vmem:[#allocation2 + $0x9] sm:$0xff]
    %v491 = vld [vmem:[#allocation2 + $0x19] sm:$0xff]
    %v492 = vld [vmem:[#allocation2 + $0x21] sm:$0xff]
    %v493 = vld [vmem:[#allocation2 + $0x2] sm:$0xff]
    %v494 = vld [vmem:[#allocation2 + $0xa] sm:$0xff]
    %v495 = vld [vmem:[#allocation2 + $0x1a] sm:$0xff]
    %v496 = vld [vmem:[#allocation2 + $0x22] sm:$0xff]
    %501 = vrot.lane.b32.xlu0 %v489, 64
    %v502 = vpop.permute.xlu0 %501
    %503 = vrot.lane.b32.xlu0 %v490, 64
    %v504 = vpop.permute.xlu0 %503
    %505 = vrot.lane.b32.xlu0 %v491, 64
    %v506 = vpop.permute.xlu0 %505
    %507 = vrot.lane.b32.xlu0 %v492, 64
    %v508 = vpop.permute.xlu0 %507
    %v513 = vsel %vm40, %v485, %v502
    %v514 = vsel %vm40, %v486, %v504
    %v515 = vsel %vm40, %v487, %v506
    %v516 = vsel %vm40, %v488, %v508
    %s517 = scalar_lea.vmem %s1, 192
    %v518 = vld [vmem:[%s517] sm:$0xff]
    %v519 = vld [vmem:[%s517 + $0x8] sm:$0xff]
    %v520 = vld [vmem:[%s517 + $0x10] sm:$0xff]
    %v521 = vld [vmem:[%s517 + $0x18] sm:$0xff]
    %v522 = vld [vmem:[%s517 + $0x20] sm:$0xff]
    %v523 = vld [vmem:[%s517 + $0x28] sm:$0xff]
    %v524 = vld [vmem:[%s517 + $0x30] sm:$0xff]
    %v525 = vld [vmem:[%s517 + $0x38] sm:$0xff]
    %v526 = vld [vmem:[%s517 + $0x40] sm:$0xff]
    %v527 = vld [vmem:[%s517 + $0x48] sm:$0xff]
    %v528 = vld [vmem:[%s517 + $0x50] sm:$0xff]
    %v529 = vld [vmem:[%s517 + $0x58] sm:$0xff]
    %v530 = vld [vmem:[%s517 + $0x60] sm:$0xff]
    %v531 = vld [vmem:[%s517 + $0x68] sm:$0xff]
    %v532 = vld [vmem:[%s517 + $0x70] sm:$0xff]
    %v533 = vld [vmem:[%s517 + $0x78] sm:$0xff]
    %v534 = vld [vmem:[%s517 + $0x80] sm:$0xff]
    %v535 = vld [vmem:[%s517 + $0x88] sm:$0xff]
    %v536 = vld [vmem:[%s517 + $0x90] sm:$0xff]
    %v537 = vld [vmem:[%s517 + $0x98] sm:$0xff]
    %v538 = vld [vmem:[%s517 + $0xa0] sm:$0xff]
    %v539 = vld [vmem:[%s517 + $0xa8] sm:$0xff]
    %v540 = vld [vmem:[%s517 + $0xb0] sm:$0xff]
    %v541 = vld [vmem:[%s517 + $0xb8] sm:$0xff]
    %v543 = vsel %vm40, %v493, 0
    %v546 = vsel %vm40, %v494, 0
    %v549 = vsel %vm40, %v495, 0
    %v552 = vsel %vm40, %v496, 0
    %554 = vmatprep.subr.mxu0 0.0
    %555 = vmatpush1.msra.mxu0 %v518
    %556 = vmatprep.subr.mxu0 0.0
    %557 = vmatpush1.msra.mxu0 %v519
    %558 = vmatprep.subr.mxu0 0.0
    %559 = vmatpush1.msra.mxu0 %v520
    %560 = vmatprep.subr.mxu0 0.0
    %561 = vmatpush1.msra.mxu0 %v521
    %562 = vmatprep.subr.mxu0 0.0
    %563 = vmatpush1.msra.mxu0 %v522
    %564 = vmatprep.subr.mxu0 0.0
    %565 = vmatpush1.msra.mxu0 %v523
    %566 = vmatprep.subr.mxu0 0.0
    %567 = vmatpush1.msra.mxu0 %v524
    %568 = vmatprep.subr.mxu0 0.0
    %569 = vmatpush1.msra.mxu0 %v525
    %570 = vmatprep.subr.mxu0 0.0
    %571 = vmatpush1.msra.mxu0 %v526
    %572 = vmatprep.subr.mxu0 0.0
    %573 = vmatpush1.msra.mxu0 %v527
    %574 = vmatprep.subr.mxu0 0.0
    %575 = vmatpush1.msra.mxu0 %v528
    %576 = vmatprep.subr.mxu0 0.0
    %577 = vmatpush1.msra.mxu0 %v529
    %578 = vmatprep.subr.mxu0 0.0
    %579 = vmatpush1.msra.mxu0 %v530
    %580 = vmatprep.subr.mxu0 0.0
    %581 = vmatpush1.msra.mxu0 %v531
    %582 = vmatprep.subr.mxu0 0.0
    %583 = vmatpush1.msra.mxu0 %v532
    %584 = vmatprep.subr.mxu0 0.0
    %585 = vmatpush1.msra.mxu0 %v533
    %586 = vmatprep.subr.mxu0 0.0
    %587 = vmatpush1.msra.mxu0 %v534
    %588 = vmatprep.subr.mxu0 0.0
    %589 = vmatpush1.msra.mxu0 %v535
    %590 = vmatprep.subr.mxu0 0.0
    %591 = vmatpush1.msra.mxu0 %v536
    %592 = vmatprep.subr.mxu0 0.0
    %593 = vmatpush1.msra.mxu0 %v537
    %594 = vmatprep.subr.mxu0 0.0
    %595 = vmatpush1.msra.mxu0 %v538
    %596 = vmatprep.subr.mxu0 0.0
    %597 = vmatpush1.msra.mxu0 %v539
    %598 = vmatprep.subr.mxu0 0.0
    %599 = vmatpush1.msra.mxu0 %v540
    %600 = vmatprep.subr.mxu0 0.0
    %601 = vmatpush1.msra.mxu0 %v541
    %602 = vmatprep.subr.mxu0 0.0
    %603 = vmatpush1.msra.mxu0 0.0
    %604 = vmatprep.subr.mxu0 0.0
    %605 = vmatpush1.msra.mxu0 0.0
    %606 = vmatprep.subr.mxu0 0.0
    %607 = vmatpush1.msra.mxu0 0.0
    %608 = vmatprep.subr.mxu0 0.0
    %609 = vmatpush1.msra.mxu0 0.0
    %610 = vmatprep.subr.mxu0 0.0
    %611 = vmatpush1.msra.mxu0 0.0
    %612 = vmatprep.subr.mxu0 0.0
    %613 = vmatpush1.msra.mxu0 0.0
    %614 = vmatprep.subr.mxu0 0.0
    %615 = vmatpush1.msra.mxu0 0.0
    %616 = vmatprep.subr.mxu0 0.0
    %617 = vmatpush1.msra.mxu0 0.0
    %618 = vmatprep.mubr.f32.mxu0 %v543
    %619 = vmatmul.mubr.f32.gmra.mrb[0].mxu0 %v513
    %v620 = vpop.f32.mrb[0].mxu0
    %v621 = vadd.f32 0.0, %v620
    %v622 = vpop.f32.mrb[0].mxu0
    %623 = vmatprep.mubr.f32.mxu0 %v546
    %624 = vmatmul.mubr.f32.gmra.mrb[0].mxu0 %v514
    %v625 = vpop.f32.mrb[0].mxu0
    %v626 = vadd.f32 0.0, %v625
    %v627 = vpop.f32.mrb[0].mxu0
    %628 = vmatprep.mubr.f32.mxu0 %v549
    %629 = vmatmul.mubr.f32.gmra.mrb[0].mxu0 %v515
    %v630 = vpop.f32.mrb[0].mxu0
    %v631 = vadd.f32 0.0, %v630
    %v632 = vpop.f32.mrb[0].mxu0
    %633 = vmatprep.mubr.f32.mxu0 %v552
    %634 = vmatmul.mubr.f32.gmra.mrb[0].mxu0 %v516
    %v635 = vpop.f32.mrb[0].mxu0
    %v636 = vadd.f32 0.0, %v635
    %v637 = vpop.f32.mrb[0].mxu0
    %638 = vdwg.mxu0
    %v639 = vmul.f32 %v621, %v621
    %v640 = vmul.f32 %v626, %v626
    %v641 = vmul.f32 %v631, %v631
    %v642 = vmul.f32 %v636, %v636
    %v644 = vsel %vm40, %v621, 0
    %v647 = vsel %vm40, %v626, 0
    %v650 = vsel %vm40, %v631, 0
    %v653 = vsel %vm40, %v636, 0
    %v656 = vsel %vm40, %v639, 0
    %v659 = vsel %vm40, %v640, 0
    %v662 = vsel %vm40, %v641, 0
    %v665 = vsel %vm40, %v642, 0
    %667 = vmatprep.subr.mxu0 0.0
    %668 = vmatpush1.msra.mxu0 %v31
    %669 = vmatprep.subr.mxu0 0.0
    %670 = vmatpush1.msra.mxu0 %v32
    %671 = vmatprep.subr.mxu0 0.0
    %672 = vmatpush1.msra.mxu0 %v33
    %673 = vmatprep.subr.mxu0 0.0
    %674 = vmatpush1.msra.mxu0 %v34
    %675 = vmatprep.subr.mxu0 0.0
    %676 = vmatpush1.msra.mxu0 %v35
    %677 = vmatprep.subr.mxu0 0.0
    %678 = vmatpush1.msra.mxu0 %v36
    %679 = vmatprep.subr.mxu0 0.0
    %680 = vmatpush1.msra.mxu0 %v37
    %681 = vmatprep.subr.mxu0 0.0
    %682 = vmatpush1.msra.mxu0 %v38
    %683 = vmatprep.subr.mxu0 0.0
    %684 = vmatpush1.msra.mxu0 0.0
    %685 = vmatprep.subr.mxu0 0.0
    %686 = vmatpush1.msra.mxu0 0.0
    %687 = vmatprep.subr.mxu0 0.0
    %688 = vmatpush1.msra.mxu0 0.0
    %689 = vmatprep.subr.mxu0 0.0
    %690 = vmatpush1.msra.mxu0 0.0
    %691 = vmatprep.subr.mxu0 0.0
    %692 = vmatpush1.msra.mxu0 0.0
    %693 = vmatprep.subr.mxu0 0.0
    %694 = vmatpush1.msra.mxu0 0.0
    %695 = vmatprep.subr.mxu0 0.0
    %696 = vmatpush1.msra.mxu0 0.0
    %697 = vmatprep.subr.mxu0 0.0
    %698 = vmatpush1.msra.mxu0 0.0
    %699 = vmatprep.subr.mxu0 0.0
    %700 = vmatpush1.msra.mxu0 0.0
    %701 = vmatprep.subr.mxu0 0.0
    %702 = vmatpush1.msra.mxu0 0.0
    %703 = vmatprep.subr.mxu0 0.0
    %704 = vmatpush1.msra.mxu0 0.0
    %705 = vmatprep.subr.mxu0 0.0
    %706 = vmatpush1.msra.mxu0 0.0
    %707 = vmatprep.subr.mxu0 0.0
    %708 = vmatpush1.msra.mxu0 0.0
    %709 = vmatprep.subr.mxu0 0.0
    %710 = vmatpush1.msra.mxu0 0.0
    %711 = vmatprep.subr.mxu0 0.0
    %712 = vmatpush1.msra.mxu0 0.0
    %713 = vmatprep.subr.mxu0 0.0
    %714 = vmatpush1.msra.mxu0 0.0
    %715 = vmatprep.subr.mxu0 0.0
    %716 = vmatpush1.msra.mxu0 0.0
    %717 = vmatprep.subr.mxu0 0.0
    %718 = vmatpush1.msra.mxu0 0.0
    %719 = vmatprep.subr.mxu0 0.0
    %720 = vmatpush1.msra.mxu0 0.0
    %721 = vmatprep.subr.mxu0 0.0
    %722 = vmatpush1.msra.mxu0 0.0
    %723 = vmatprep.subr.mxu0 0.0
    %724 = vmatpush1.msra.mxu0 0.0
    %725 = vmatprep.subr.mxu0 0.0
    %726 = vmatpush1.msra.mxu0 0.0
    %727 = vmatprep.subr.mxu0 0.0
    %728 = vmatpush1.msra.mxu0 0.0
    %729 = vmatprep.subr.mxu0 0.0
    %730 = vmatpush1.msra.mxu0 0.0
    %731 = vmatprep.mubr.f32.mxu0 0.0
    %732 = vmatmul.mubr.f32.gmra.mrb[0].mxu0 %v644
    %v733 = vpop.f32.mrb[0].mxu0
    %v734 = vadd.f32 0.0, %v733
    %v735 = vpop.f32.mrb[0].mxu0
    %736 = vmatprep.mubr.f32.mxu0 0.0
    %737 = vmatmul.mubr.f32.gmra.mrb[0].mxu0 %v647
    %v738 = vpop.f32.mrb[0].mxu0
    %v739 = vadd.f32 0.0, %v738
    %v740 = vpop.f32.mrb[0].mxu0
    %741 = vmatprep.mubr.f32.mxu0 0.0
    %742 = vmatmul.mubr.f32.gmra.mrb[0].mxu0 %v650
    %v743 = vpop.f32.mrb[0].mxu0
    %v744 = vadd.f32 0.0, %v743
    %v745 = vpop.f32.mrb[0].mxu0
    %746 = vmatprep.mubr.f32.mxu0 0.0
    %747 = vmatmul.mubr.f32.gmra.mrb[0].mxu0 %v653
    %v748 = vpop.f32.mrb[0].mxu0
    %v749 = vadd.f32 0.0, %v748
    %v750 = vpop.f32.mrb[0].mxu0
    %751 = vmatprep.mubr.f32.mxu0 0.0
    %752 = vmatmul.mubr.f32.gmra.mrb[0].mxu0 %v656
    %v753 = vpop.f32.mrb[0].mxu0
    %v754 = vadd.f32 0.0, %v753
    %v755 = vpop.f32.mrb[0].mxu0
    %756 = vmatprep.mubr.f32.mxu0 0.0
    %757 = vmatmul.mubr.f32.gmra.mrb[0].mxu0 %v659
    %v758 = vpop.f32.mrb[0].mxu0
    %v759 = vadd.f32 0.0, %v758
    %v760 = vpop.f32.mrb[0].mxu0
    %761 = vmatprep.mubr.f32.mxu0 0.0
    %762 = vmatmul.mubr.f32.gmra.mrb[0].mxu0 %v662
    %v763 = vpop.f32.mrb[0].mxu0
    %v764 = vadd.f32 0.0, %v763
    %v765 = vpop.f32.mrb[0].mxu0
    %766 = vmatprep.mubr.f32.mxu0 0.0
    %767 = vmatmul.mubr.f32.gmra.mrb[0].mxu0 %v665
    %v768 = vpop.f32.mrb[0].mxu0
    %v769 = vadd.f32 0.0, %v768
    %v770 = vpop.f32.mrb[0].mxu0
    %771 = vdwg.mxu0
    %v772 = vsel %vm338, %v734, 0.0
    %v773 = vsel %vm338, %v739, 0.0
    %v774 = vadd.f32 %v772, %v773
    %v775 = vsel %vm338, %v744, 0.0
    %v776 = vadd.f32 %v774, %v775
    %v777 = vsel %vm338, %v749, 0.0
    %v778 = vadd.f32 %v776, %v777
    %v779 = vrot.slane %v778, 4
    %v780 = vadd.f32 %v778, %v779
    %v781 = vrot.slane %v780, 2
    %v782 = vadd.f32 %v780, %v781
    %v783 = vrot.slane %v782, 1
    %v784 = vadd.f32 %v782, %v783
    %v785 = vmul.f32 %v784, 0.001953125
    %v786 = vsel %vm338, %v754, 0.0
    %v787 = vsel %vm338, %v759, 0.0
    %v788 = vadd.f32 %v786, %v787
    %v789 = vsel %vm338, %v764, 0.0
    %v790 = vadd.f32 %v788, %v789
    %v791 = vsel %vm338, %v769, 0.0
    %v792 = vadd.f32 %v790, %v791
    %v793 = vrot.slane %v792, 4
    %v794 = vadd.f32 %v792, %v793
    %v795 = vrot.slane %v794, 2
    %v796 = vadd.f32 %v794, %v795
    %v797 = vrot.slane %v796, 1
    %v798 = vadd.f32 %v796, %v797
    %v799 = vmul.f32 %v798, 0.001953125
    %v800 = vmul.f32 %v785, %v785
    %v801 = vsub.f32 %v799, %v800
    %s802 = scalar_lea.vmem %s2, 1
    %v803 = vld [vmem:[%s802] sm:$0x1]
    %v804 = vadd.f32 %v801, 1e-05
    %v805 = vrsqrt.pop %v804
    %v806 = vmul.f32 %v803, %v805
    %s807 = scalar_lea.vmem %s3, 1
    %v808 = vld [vmem:[%s807] sm:$0x1]
    %v809 = vmul.f32 %v785, %v806
    %v810 = vsub.f32 %v808, %v809
    %v812 = vlaneseq
    %v813 = vshrl.u32 %v812, 7
    %v814 = vsub.s32 0, %v813
    %v815 = vrot.slane %v810, %v814
    %v817 = vsel %vm382, %v806, %v815
    %v819 = vsel %vm338, %v817, 0
    %821 = vmatprep.subr.mxu0 0.0
    %822 = vmatpush1.msra.mxu0 %v389
    %823 = vmatprep.subr.mxu0 0.0
    %824 = vmatpush1.msra.mxu0 0.0
    %825 = vmatprep.subr.mxu0 0.0
    %826 = vmatpush1.msra.mxu0 0.0
    %827 = vmatprep.subr.mxu0 0.0
    %828 = vmatpush1.msra.mxu0 0.0
    %829 = vmatprep.subr.mxu0 0.0
    %830 = vmatpush1.msra.mxu0 0.0
    %831 = vmatprep.subr.mxu0 0.0
    %832 = vmatpush1.msra.mxu0 0.0
    %833 = vmatprep.subr.mxu0 0.0
    %834 = vmatpush1.msra.mxu0 0.0
    %835 = vmatprep.subr.mxu0 0.0
    %836 = vmatpush1.msra.mxu0 0.0
    %837 = vmatprep.subr.mxu0 0.0
    %838 = vmatpush1.msra.mxu0 0.0
    %839 = vmatprep.subr.mxu0 0.0
    %840 = vmatpush1.msra.mxu0 0.0
    %841 = vmatprep.subr.mxu0 0.0
    %842 = vmatpush1.msra.mxu0 0.0
    %843 = vmatprep.subr.mxu0 0.0
    %844 = vmatpush1.msra.mxu0 0.0
    %845 = vmatprep.subr.mxu0 0.0
    %846 = vmatpush1.msra.mxu0 0.0
    %847 = vmatprep.subr.mxu0 0.0
    %848 = vmatpush1.msra.mxu0 0.0
    %849 = vmatprep.subr.mxu0 0.0
    %850 = vmatpush1.msra.mxu0 0.0
    %851 = vmatprep.subr.mxu0 0.0
    %852 = vmatpush1.msra.mxu0 0.0
    %853 = vmatprep.subr.mxu0 0.0
    %854 = vmatpush1.msra.mxu0 0.0
    %855 = vmatprep.subr.mxu0 0.0
    %856 = vmatpush1.msra.mxu0 0.0
    %857 = vmatprep.subr.mxu0 0.0
    %858 = vmatpush1.msra.mxu0 0.0
    %859 = vmatprep.subr.mxu0 0.0
    %860 = vmatpush1.msra.mxu0 0.0
    %861 = vmatprep.subr.mxu0 0.0
    %862 = vmatpush1.msra.mxu0 0.0
    %863 = vmatprep.subr.mxu0 0.0
    %864 = vmatpush1.msra.mxu0 0.0
    %865 = vmatprep.subr.mxu0 0.0
    %866 = vmatpush1.msra.mxu0 0.0
    %867 = vmatprep.subr.mxu0 0.0
    %868 = vmatpush1.msra.mxu0 0.0
    %869 = vmatprep.subr.mxu0 0.0
    %870 = vmatpush1.msra.mxu0 0.0
    %871 = vmatprep.subr.mxu0 0.0
    %872 = vmatpush1.msra.mxu0 0.0
    %873 = vmatprep.subr.mxu0 0.0
    %874 = vmatpush1.msra.mxu0 0.0
    %875 = vmatprep.subr.mxu0 0.0
    %876 = vmatpush1.msra.mxu0 0.0
    %877 = vmatprep.subr.mxu0 0.0
    %878 = vmatpush1.msra.mxu0 0.0
    %879 = vmatprep.subr.mxu0 0.0
    %880 = vmatpush1.msra.mxu0 0.0
    %881 = vmatprep.subr.mxu0 0.0
    %882 = vmatpush1.msra.mxu0 0.0
    %883 = vmatprep.subr.mxu0 0.0
    %884 = vmatpush1.msra.mxu0 0.0
    %885 = vmatprep.mubr.f32.mxu0 0.0
    %886 = vmatmul.mubr.f32.gmra.mrb[0].mxu0 %v819
    %v887 = vpop.f32.mrb[0].mxu0
    %v888 = vadd.f32 0.0, %v887
    %v889 = vpop.f32.mrb[0].mxu0
    %890 = vdwg.mxu0
    %v891 = vlaneseq
    %v892 = vshrl.u32 %v891, 7
    %v893 = vsub.s32 0, %v892
    %v894 = vrot.slane %v888, %v893
    %v895 = vmul.f32 %v621, %v894
    %v896 = vmul.f32 %v626, %v894
    %v897 = vmul.f32 %v631, %v894
    %v898 = vmul.f32 %v636, %v894
    %v899 = vlaneseq
    %v900 = vshrl.u32 %v899, 7
    %v901 = vsub.s32 1, %v900
    %v902 = vrot.slane %v888, %v901
    %v903 = vadd.f32 %v895, %v902
    %v904 = vadd.f32 %v896, %v902
    %v905 = vadd.f32 %v897, %v902
    %v906 = vadd.f32 %v898, %v902
    %v907 = vmax.f32 %v903, 0.0
    %v908 = vmax.f32 %v904, 0.0
    %v909 = vmax.f32 %v905, 0.0
    %v910 = vmax.f32 %v906, 0.0
    %911 = vst.msk [vmem:[#allocation2 + $0x1] sm:$0xff] %vm40, %v907
    %912 = vst.msk [vmem:[#allocation2 + $0x9] sm:$0xff] %vm40, %v908
    %913 = vst.msk [vmem:[#allocation2 + $0x19] sm:$0xff] %vm40, %v909
    %914 = vst.msk [vmem:[#allocation2 + $0x21] sm:$0xff] %vm40, %v910
    %v915 = vld [vmem:[#allocation2] sm:$0xff]
    %v916 = vld [vmem:[#allocation2 + $0x8] sm:$0xff]
    %v917 = vld [vmem:[#allocation2 + $0x18] sm:$0xff]
    %v918 = vld [vmem:[#allocation2 + $0x20] sm:$0xff]
    %v919 = vld [vmem:[#allocation2 + $0x1] sm:$0xff]
    %v920 = vld [vmem:[#allocation2 + $0x9] sm:$0xff]
    %v921 = vld [vmem:[#allocation2 + $0x19] sm:$0xff]
    %v922 = vld [vmem:[#allocation2 + $0x21] sm:$0xff]
    %v923 = vld [vmem:[#allocation2 + $0x2] sm:$0xff]
    %v924 = vld [vmem:[#allocation2 + $0xa] sm:$0xff]
    %v925 = vld [vmem:[#allocation2 + $0x1a] sm:$0xff]
    %v926 = vld [vmem:[#allocation2 + $0x22] sm:$0xff]
    %931 = vrot.lane.b32.xlu0 %v919, 64
    %v932 = vpop.permute.xlu0 %931
    %933 = vrot.lane.b32.xlu0 %v920, 64
    %v934 = vpop.permute.xlu0 %933
    %935 = vrot.lane.b32.xlu0 %v921, 64
    %v936 = vpop.permute.xlu0 %935
    %937 = vrot.lane.b32.xlu0 %v922, 64
    %v938 = vpop.permute.xlu0 %937
    %v943 = vsel %vm40, %v915, %v932
    %v944 = vsel %vm40, %v916, %v934
    %v945 = vsel %vm40, %v917, %v936
    %v946 = vsel %vm40, %v918, %v938
    %s947 = scalar_lea.vmem %s1, 384
    %v948 = vld [vmem:[%s947] sm:$0xff]
    %v949 = vld [vmem:[%s947 + $0x8] sm:$0xff]
    %v950 = vld [vmem:[%s947 + $0x10] sm:$0xff]
    %v951 = vld [vmem:[%s947 + $0x18] sm:$0xff]
    %v952 = vld [vmem:[%s947 + $0x20] sm:$0xff]
    %v953 = vld [vmem:[%s947 + $0x28] sm:$0xff]
    %v954 = vld [vmem:[%s947 + $0x30] sm:$0xff]
    %v955 = vld [vmem:[%s947 + $0x38] sm:$0xff]
    %v956 = vld [vmem:[%s947 + $0x40] sm:$0xff]
    %v957 = vld [vmem:[%s947 + $0x48] sm:$0xff]
    %v958 = vld [vmem:[%s947 + $0x50] sm:$0xff]
    %v959 = vld [vmem:[%s947 + $0x58] sm:$0xff]
    %v960 = vld [vmem:[%s947 + $0x60] sm:$0xff]
    %v961 = vld [vmem:[%s947 + $0x68] sm:$0xff]
    %v962 = vld [vmem:[%s947 + $0x70] sm:$0xff]
    %v963 = vld [vmem:[%s947 + $0x78] sm:$0xff]
    %v964 = vld [vmem:[%s947 + $0x80] sm:$0xff]
    %v965 = vld [vmem:[%s947 + $0x88] sm:$0xff]
    %v966 = vld [vmem:[%s947 + $0x90] sm:$0xff]
    %v967 = vld [vmem:[%s947 + $0x98] sm:$0xff]
    %v968 = vld [vmem:[%s947 + $0xa0] sm:$0xff]
    %v969 = vld [vmem:[%s947 + $0xa8] sm:$0xff]
    %v970 = vld [vmem:[%s947 + $0xb0] sm:$0xff]
    %v971 = vld [vmem:[%s947 + $0xb8] sm:$0xff]
    %v973 = vsel %vm40, %v923, 0
    %v976 = vsel %vm40, %v924, 0
    %v979 = vsel %vm40, %v925, 0
    %v982 = vsel %vm40, %v926, 0
    %984 = vmatprep.subr.mxu0 0.0
    %985 = vmatpush1.msra.mxu0 %v948
    %986 = vmatprep.subr.mxu0 0.0
    %987 = vmatpush1.msra.mxu0 %v949
    %988 = vmatprep.subr.mxu0 0.0
    %989 = vmatpush1.msra.mxu0 %v950
    %990 = vmatprep.subr.mxu0 0.0
    %991 = vmatpush1.msra.mxu0 %v951
    %992 = vmatprep.subr.mxu0 0.0
    %993 = vmatpush1.msra.mxu0 %v952
    %994 = vmatprep.subr.mxu0 0.0
    %995 = vmatpush1.msra.mxu0 %v953
    %996 = vmatprep.subr.mxu0 0.0
    %997 = vmatpush1.msra.mxu0 %v954
    %998 = vmatprep.subr.mxu0 0.0
    %999 = vmatpush1.msra.mxu0 %v955
    %1000 = vmatprep.subr.mxu0 0.0
    %1001 = vmatpush1.msra.mxu0 %v956
    %1002 = vmatprep.subr.mxu0 0.0
    %1003 = vmatpush1.msra.mxu0 %v957
    %1004 = vmatprep.subr.mxu0 0.0
    %1005 = vmatpush1.msra.mxu0 %v958
    %1006 = vmatprep.subr.mxu0 0.0
    %1007 = vmatpush1.msra.mxu0 %v959
    %1008 = vmatprep.subr.mxu0 0.0
    %1009 = vmatpush1.msra.mxu0 %v960
    %1010 = vmatprep.subr.mxu0 0.0
    %1011 = vmatpush1.msra.mxu0 %v961
    %1012 = vmatprep.subr.mxu0 0.0
    %1013 = vmatpush1.msra.mxu0 %v962
    %1014 = vmatprep.subr.mxu0 0.0
    %1015 = vmatpush1.msra.mxu0 %v963
    %1016 = vmatprep.subr.mxu0 0.0
    %1017 = vmatpush1.msra.mxu0 %v964
    %1018 = vmatprep.subr.mxu0 0.0
    %1019 = vmatpush1.msra.mxu0 %v965
    %1020 = vmatprep.subr.mxu0 0.0
    %1021 = vmatpush1.msra.mxu0 %v966
    %1022 = vmatprep.subr.mxu0 0.0
    %1023 = vmatpush1.msra.mxu0 %v967
    %1024 = vmatprep.subr.mxu0 0.0
    %1025 = vmatpush1.msra.mxu0 %v968
    %1026 = vmatprep.subr.mxu0 0.0
    %1027 = vmatpush1.msra.mxu0 %v969
    %1028 = vmatprep.subr.mxu0 0.0
    %1029 = vmatpush1.msra.mxu0 %v970
    %1030 = vmatprep.subr.mxu0 0.0
    %1031 = vmatpush1.msra.mxu0 %v971
    %1032 = vmatprep.subr.mxu0 0.0
    %1033 = vmatpush1.msra.mxu0 0.0
    %1034 = vmatprep.subr.mxu0 0.0
    %1035 = vmatpush1.msra.mxu0 0.0
    %1036 = vmatprep.subr.mxu0 0.0
    %1037 = vmatpush1.msra.mxu0 0.0
    %1038 = vmatprep.subr.mxu0 0.0
    %1039 = vmatpush1.msra.mxu0 0.0
    %1040 = vmatprep.subr.mxu0 0.0
    %1041 = vmatpush1.msra.mxu0 0.0
    %1042 = vmatprep.subr.mxu0 0.0
    %1043 = vmatpush1.msra.mxu0 0.0
    %1044 = vmatprep.subr.mxu0 0.0
    %1045 = vmatpush1.msra.mxu0 0.0
    %1046 = vmatprep.subr.mxu0 0.0
    %1047 = vmatpush1.msra.mxu0 0.0
    %1048 = vmatprep.mubr.f32.mxu0 %v973
    %1049 = vmatmul.mubr.f32.gmra.mrb[0].mxu0 %v943
    %v1050 = vpop.f32.mrb[0].mxu0
    %v1051 = vadd.f32 0.0, %v1050
    %v1052 = vpop.f32.mrb[0].mxu0
    %1053 = vmatprep.mubr.f32.mxu0 %v976
    %1054 = vmatmul.mubr.f32.gmra.mrb[0].mxu0 %v944
    %v1055 = vpop.f32.mrb[0].mxu0
    %v1056 = vadd.f32 0.0, %v1055
    %v1057 = vpop.f32.mrb[0].mxu0
    %1058 = vmatprep.mubr.f32.mxu0 %v979
    %1059 = vmatmul.mubr.f32.gmra.mrb[0].mxu0 %v945
    %v1060 = vpop.f32.mrb[0].mxu0
    %v1061 = vadd.f32 0.0, %v1060
    %v1062 = vpop.f32.mrb[0].mxu0
    %1063 = vmatprep.mubr.f32.mxu0 %v982
    %1064 = vmatmul.mubr.f32.gmra.mrb[0].mxu0 %v946
    %v1065 = vpop.f32.mrb[0].mxu0
    %v1066 = vadd.f32 0.0, %v1065
    %v1067 = vpop.f32.mrb[0].mxu0
    %1068 = vdwg.mxu0
    %v1069 = vmul.f32 %v1051, %v1051
    %v1070 = vmul.f32 %v1056, %v1056
    %v1071 = vmul.f32 %v1061, %v1061
    %v1072 = vmul.f32 %v1066, %v1066
    %v1074 = vsel %vm40, %v1051, 0
    %v1077 = vsel %vm40, %v1056, 0
    %v1080 = vsel %vm40, %v1061, 0
    %v1083 = vsel %vm40, %v1066, 0
    %v1086 = vsel %vm40, %v1069, 0
    %v1089 = vsel %vm40, %v1070, 0
    %v1092 = vsel %vm40, %v1071, 0
    %v1095 = vsel %vm40, %v1072, 0
    %1097 = vmatprep.subr.mxu0 0.0
    %1098 = vmatpush1.msra.mxu0 %v31
    %1099 = vmatprep.subr.mxu0 0.0
    %1100 = vmatpush1.msra.mxu0 %v32
    %1101 = vmatprep.subr.mxu0 0.0
    %1102 = vmatpush1.msra.mxu0 %v33
    %1103 = vmatprep.subr.mxu0 0.0
    %1104 = vmatpush1.msra.mxu0 %v34
    %1105 = vmatprep.subr.mxu0 0.0
    %1106 = vmatpush1.msra.mxu0 %v35
    %1107 = vmatprep.subr.mxu0 0.0
    %1108 = vmatpush1.msra.mxu0 %v36
    %1109 = vmatprep.subr.mxu0 0.0
    %1110 = vmatpush1.msra.mxu0 %v37
    %1111 = vmatprep.subr.mxu0 0.0
    %1112 = vmatpush1.msra.mxu0 %v38
    %1113 = vmatprep.subr.mxu0 0.0
    %1114 = vmatpush1.msra.mxu0 0.0
    %1115 = vmatprep.subr.mxu0 0.0
    %1116 = vmatpush1.msra.mxu0 0.0
    %1117 = vmatprep.subr.mxu0 0.0
    %1118 = vmatpush1.msra.mxu0 0.0
    %1119 = vmatprep.subr.mxu0 0.0
    %1120 = vmatpush1.msra.mxu0 0.0
    %1121 = vmatprep.subr.mxu0 0.0
    %1122 = vmatpush1.msra.mxu0 0.0
    %1123 = vmatprep.subr.mxu0 0.0
    %1124 = vmatpush1.msra.mxu0 0.0
    %1125 = vmatprep.subr.mxu0 0.0
    %1126 = vmatpush1.msra.mxu0 0.0
    %1127 = vmatprep.subr.mxu0 0.0
    %1128 = vmatpush1.msra.mxu0 0.0
    %1129 = vmatprep.subr.mxu0 0.0
    %1130 = vmatpush1.msra.mxu0 0.0
    %1131 = vmatprep.subr.mxu0 0.0
    %1132 = vmatpush1.msra.mxu0 0.0
    %1133 = vmatprep.subr.mxu0 0.0
    %1134 = vmatpush1.msra.mxu0 0.0
    %1135 = vmatprep.subr.mxu0 0.0
    %1136 = vmatpush1.msra.mxu0 0.0
    %1137 = vmatprep.subr.mxu0 0.0
    %1138 = vmatpush1.msra.mxu0 0.0
    %1139 = vmatprep.subr.mxu0 0.0
    %1140 = vmatpush1.msra.mxu0 0.0
    %1141 = vmatprep.subr.mxu0 0.0
    %1142 = vmatpush1.msra.mxu0 0.0
    %1143 = vmatprep.subr.mxu0 0.0
    %1144 = vmatpush1.msra.mxu0 0.0
    %1145 = vmatprep.subr.mxu0 0.0
    %1146 = vmatpush1.msra.mxu0 0.0
    %1147 = vmatprep.subr.mxu0 0.0
    %1148 = vmatpush1.msra.mxu0 0.0
    %1149 = vmatprep.subr.mxu0 0.0
    %1150 = vmatpush1.msra.mxu0 0.0
    %1151 = vmatprep.subr.mxu0 0.0
    %1152 = vmatpush1.msra.mxu0 0.0
    %1153 = vmatprep.subr.mxu0 0.0
    %1154 = vmatpush1.msra.mxu0 0.0
    %1155 = vmatprep.subr.mxu0 0.0
    %1156 = vmatpush1.msra.mxu0 0.0
    %1157 = vmatprep.subr.mxu0 0.0
    %1158 = vmatpush1.msra.mxu0 0.0
    %1159 = vmatprep.subr.mxu0 0.0
    %1160 = vmatpush1.msra.mxu0 0.0
    %1161 = vmatprep.mubr.f32.mxu0 0.0
    %1162 = vmatmul.mubr.f32.gmra.mrb[0].mxu0 %v1074
    %v1163 = vpop.f32.mrb[0].mxu0
    %v1164 = vadd.f32 0.0, %v1163
    %v1165 = vpop.f32.mrb[0].mxu0
    %1166 = vmatprep.mubr.f32.mxu0 0.0
    %1167 = vmatmul.mubr.f32.gmra.mrb[0].mxu0 %v1077
    %v1168 = vpop.f32.mrb[0].mxu0
    %v1169 = vadd.f32 0.0, %v1168
    %v1170 = vpop.f32.mrb[0].mxu0
    %1171 = vmatprep.mubr.f32.mxu0 0.0
    %1172 = vmatmul.mubr.f32.gmra.mrb[0].mxu0 %v1080
    %v1173 = vpop.f32.mrb[0].mxu0
    %v1174 = vadd.f32 0.0, %v1173
    %v1175 = vpop.f32.mrb[0].mxu0
    %1176 = vmatprep.mubr.f32.mxu0 0.0
    %1177 = vmatmul.mubr.f32.gmra.mrb[0].mxu0 %v1083
    %v1178 = vpop.f32.mrb[0].mxu0
    %v1179 = vadd.f32 0.0, %v1178
    %v1180 = vpop.f32.mrb[0].mxu0
    %1181 = vmatprep.mubr.f32.mxu0 0.0
    %1182 = vmatmul.mubr.f32.gmra.mrb[0].mxu0 %v1086
    %v1183 = vpop.f32.mrb[0].mxu0
    %v1184 = vadd.f32 0.0, %v1183
    %v1185 = vpop.f32.mrb[0].mxu0
    %1186 = vmatprep.mubr.f32.mxu0 0.0
    %1187 = vmatmul.mubr.f32.gmra.mrb[0].mxu0 %v1089
    %v1188 = vpop.f32.mrb[0].mxu0
    %v1189 = vadd.f32 0.0, %v1188
    %v1190 = vpop.f32.mrb[0].mxu0
    %1191 = vmatprep.mubr.f32.mxu0 0.0
    %1192 = vmatmul.mubr.f32.gmra.mrb[0].mxu0 %v1092
    %v1193 = vpop.f32.mrb[0].mxu0
    %v1194 = vadd.f32 0.0, %v1193
    %v1195 = vpop.f32.mrb[0].mxu0
    %1196 = vmatprep.mubr.f32.mxu0 0.0
    %1197 = vmatmul.mubr.f32.gmra.mrb[0].mxu0 %v1095
    %v1198 = vpop.f32.mrb[0].mxu0
    %v1199 = vadd.f32 0.0, %v1198
    %v1200 = vpop.f32.mrb[0].mxu0
    %1201 = vdwg.mxu0
    %v1202 = vsel %vm338, %v1164, 0.0
    %v1203 = vsel %vm338, %v1169, 0.0
    %v1204 = vadd.f32 %v1202, %v1203
    %v1205 = vsel %vm338, %v1174, 0.0
    %v1206 = vadd.f32 %v1204, %v1205
    %v1207 = vsel %vm338, %v1179, 0.0
    %v1208 = vadd.f32 %v1206, %v1207
    %v1209 = vrot.slane %v1208, 4
    %v1210 = vadd.f32 %v1208, %v1209
    %v1211 = vrot.slane %v1210, 2
    %v1212 = vadd.f32 %v1210, %v1211
    %v1213 = vrot.slane %v1212, 1
    %v1214 = vadd.f32 %v1212, %v1213
    %v1215 = vmul.f32 %v1214, 0.001953125
    %v1216 = vsel %vm338, %v1184, 0.0
    %v1217 = vsel %vm338, %v1189, 0.0
    %v1218 = vadd.f32 %v1216, %v1217
    %v1219 = vsel %vm338, %v1194, 0.0
    %v1220 = vadd.f32 %v1218, %v1219
    %v1221 = vsel %vm338, %v1199, 0.0
    %v1222 = vadd.f32 %v1220, %v1221
    %v1223 = vrot.slane %v1222, 4
    %v1224 = vadd.f32 %v1222, %v1223
    %v1225 = vrot.slane %v1224, 2
    %v1226 = vadd.f32 %v1224, %v1225
    %v1227 = vrot.slane %v1226, 1
    %v1228 = vadd.f32 %v1226, %v1227
    %v1229 = vmul.f32 %v1228, 0.001953125
    %v1230 = vmul.f32 %v1215, %v1215
    %v1231 = vsub.f32 %v1229, %v1230
    %s1232 = scalar_lea.vmem %s2, 2
    %v1233 = vld [vmem:[%s1232] sm:$0x1]
    %v1234 = vadd.f32 %v1231, 1e-05
    %v1235 = vrsqrt.pop %v1234
    %v1236 = vmul.f32 %v1233, %v1235
    %s1237 = scalar_lea.vmem %s3, 2
    %v1238 = vld [vmem:[%s1237] sm:$0x1]
    %v1239 = vmul.f32 %v1215, %v1236
    %v1240 = vsub.f32 %v1238, %v1239
    %v1242 = vlaneseq
    %v1243 = vshrl.u32 %v1242, 7
    %v1244 = vsub.s32 0, %v1243
    %v1245 = vrot.slane %v1240, %v1244
    %v1247 = vsel %vm382, %v1236, %v1245
    %v1249 = vsel %vm338, %v1247, 0
    %1251 = vmatprep.subr.mxu0 0.0
    %1252 = vmatpush1.msra.mxu0 %v389
    %1253 = vmatprep.subr.mxu0 0.0
    %1254 = vmatpush1.msra.mxu0 0.0
    %1255 = vmatprep.subr.mxu0 0.0
    %1256 = vmatpush1.msra.mxu0 0.0
    %1257 = vmatprep.subr.mxu0 0.0
    %1258 = vmatpush1.msra.mxu0 0.0
    %1259 = vmatprep.subr.mxu0 0.0
    %1260 = vmatpush1.msra.mxu0 0.0
    %1261 = vmatprep.subr.mxu0 0.0
    %1262 = vmatpush1.msra.mxu0 0.0
    %1263 = vmatprep.subr.mxu0 0.0
    %1264 = vmatpush1.msra.mxu0 0.0
    %1265 = vmatprep.subr.mxu0 0.0
    %1266 = vmatpush1.msra.mxu0 0.0
    %1267 = vmatprep.subr.mxu0 0.0
    %1268 = vmatpush1.msra.mxu0 0.0
    %1269 = vmatprep.subr.mxu0 0.0
    %1270 = vmatpush1.msra.mxu0 0.0
    %1271 = vmatprep.subr.mxu0 0.0
    %1272 = vmatpush1.msra.mxu0 0.0
    %1273 = vmatprep.subr.mxu0 0.0
    %1274 = vmatpush1.msra.mxu0 0.0
    %1275 = vmatprep.subr.mxu0 0.0
    %1276 = vmatpush1.msra.mxu0 0.0
    %1277 = vmatprep.subr.mxu0 0.0
    %1278 = vmatpush1.msra.mxu0 0.0
    %1279 = vmatprep.subr.mxu0 0.0
    %1280 = vmatpush1.msra.mxu0 0.0
    %1281 = vmatprep.subr.mxu0 0.0
    %1282 = vmatpush1.msra.mxu0 0.0
    %1283 = vmatprep.subr.mxu0 0.0
    %1284 = vmatpush1.msra.mxu0 0.0
    %1285 = vmatprep.subr.mxu0 0.0
    %1286 = vmatpush1.msra.mxu0 0.0
    %1287 = vmatprep.subr.mxu0 0.0
    %1288 = vmatpush1.msra.mxu0 0.0
    %1289 = vmatprep.subr.mxu0 0.0
    %1290 = vmatpush1.msra.mxu0 0.0
    %1291 = vmatprep.subr.mxu0 0.0
    %1292 = vmatpush1.msra.mxu0 0.0
    %1293 = vmatprep.subr.mxu0 0.0
    %1294 = vmatpush1.msra.mxu0 0.0
    %1295 = vmatprep.subr.mxu0 0.0
    %1296 = vmatpush1.msra.mxu0 0.0
    %1297 = vmatprep.subr.mxu0 0.0
    %1298 = vmatpush1.msra.mxu0 0.0
    %1299 = vmatprep.subr.mxu0 0.0
    %1300 = vmatpush1.msra.mxu0 0.0
    %1301 = vmatprep.subr.mxu0 0.0
    %1302 = vmatpush1.msra.mxu0 0.0
    %1303 = vmatprep.subr.mxu0 0.0
    %1304 = vmatpush1.msra.mxu0 0.0
    %1305 = vmatprep.subr.mxu0 0.0
    %1306 = vmatpush1.msra.mxu0 0.0
    %1307 = vmatprep.subr.mxu0 0.0
    %1308 = vmatpush1.msra.mxu0 0.0
    %1309 = vmatprep.subr.mxu0 0.0
    %1310 = vmatpush1.msra.mxu0 0.0
    %1311 = vmatprep.subr.mxu0 0.0
    %1312 = vmatpush1.msra.mxu0 0.0
    %1313 = vmatprep.subr.mxu0 0.0
    %1314 = vmatpush1.msra.mxu0 0.0
    %1315 = vmatprep.mubr.f32.mxu0 0.0
    %1316 = vmatmul.mubr.f32.gmra.mrb[0].mxu0 %v1249
    %v1317 = vpop.f32.mrb[0].mxu0
    %v1318 = vadd.f32 0.0, %v1317
    %v1319 = vpop.f32.mrb[0].mxu0
    %1320 = vdwg.mxu0
    %v1321 = vlaneseq
    %v1322 = vshrl.u32 %v1321, 7
    %v1323 = vsub.s32 0, %v1322
    %v1324 = vrot.slane %v1318, %v1323
    %v1325 = vmul.f32 %v1051, %v1324
    %v1326 = vmul.f32 %v1056, %v1324
    %v1327 = vmul.f32 %v1061, %v1324
    %v1328 = vmul.f32 %v1066, %v1324
    %v1329 = vlaneseq
    %v1330 = vshrl.u32 %v1329, 7
    %v1331 = vsub.s32 1, %v1330
    %v1332 = vrot.slane %v1318, %v1331
    %v1333 = vadd.f32 %v1325, %v1332
    %v1334 = vadd.f32 %v1326, %v1332
    %v1335 = vadd.f32 %v1327, %v1332
    %v1336 = vadd.f32 %v1328, %v1332
    %v1337 = vmax.f32 %v1333, 0.0
    %v1338 = vmax.f32 %v1334, 0.0
    %v1339 = vmax.f32 %v1335, 0.0
    %v1340 = vmax.f32 %v1336, 0.0
    %1341 = vst.msk [vmem:[#allocation2 + $0x1] sm:$0xff] %vm40, %v1337
    %1342 = vst.msk [vmem:[#allocation2 + $0x9] sm:$0xff] %vm40, %v1338
    %1343 = vst.msk [vmem:[#allocation2 + $0x19] sm:$0xff] %vm40, %v1339
    %1344 = vst.msk [vmem:[#allocation2 + $0x21] sm:$0xff] %vm40, %v1340
    %v1345 = vld [vmem:[#allocation2] sm:$0xff]
    %v1346 = vld [vmem:[#allocation2 + $0x8] sm:$0xff]
    %v1347 = vld [vmem:[#allocation2 + $0x18] sm:$0xff]
    %v1348 = vld [vmem:[#allocation2 + $0x20] sm:$0xff]
    %v1349 = vld [vmem:[#allocation2 + $0x1] sm:$0xff]
    %v1350 = vld [vmem:[#allocation2 + $0x9] sm:$0xff]
    %v1351 = vld [vmem:[#allocation2 + $0x19] sm:$0xff]
    %v1352 = vld [vmem:[#allocation2 + $0x21] sm:$0xff]
    %v1353 = vld [vmem:[#allocation2 + $0x2] sm:$0xff]
    %v1354 = vld [vmem:[#allocation2 + $0xa] sm:$0xff]
    %v1355 = vld [vmem:[#allocation2 + $0x1a] sm:$0xff]
    %v1356 = vld [vmem:[#allocation2 + $0x22] sm:$0xff]
    %1361 = vrot.lane.b32.xlu0 %v1349, 64
    %v1362 = vpop.permute.xlu0 %1361
    %1363 = vrot.lane.b32.xlu0 %v1350, 64
    %v1364 = vpop.permute.xlu0 %1363
    %1365 = vrot.lane.b32.xlu0 %v1351, 64
    %v1366 = vpop.permute.xlu0 %1365
    %1367 = vrot.lane.b32.xlu0 %v1352, 64
    %v1368 = vpop.permute.xlu0 %1367
    %v1373 = vsel %vm40, %v1345, %v1362
    %v1374 = vsel %vm40, %v1346, %v1364
    %v1375 = vsel %vm40, %v1347, %v1366
    %v1376 = vsel %vm40, %v1348, %v1368
    %s1377 = scalar_lea.vmem %s1, 576
    %v1378 = vld [vmem:[%s1377] sm:$0xff]
    %v1379 = vld [vmem:[%s1377 + $0x8] sm:$0xff]
    %v1380 = vld [vmem:[%s1377 + $0x10] sm:$0xff]
    %v1381 = vld [vmem:[%s1377 + $0x18] sm:$0xff]
    %v1382 = vld [vmem:[%s1377 + $0x20] sm:$0xff]
    %v1383 = vld [vmem:[%s1377 + $0x28] sm:$0xff]
    %v1384 = vld [vmem:[%s1377 + $0x30] sm:$0xff]
    %v1385 = vld [vmem:[%s1377 + $0x38] sm:$0xff]
    %v1386 = vld [vmem:[%s1377 + $0x40] sm:$0xff]
    %v1387 = vld [vmem:[%s1377 + $0x48] sm:$0xff]
    %v1388 = vld [vmem:[%s1377 + $0x50] sm:$0xff]
    %v1389 = vld [vmem:[%s1377 + $0x58] sm:$0xff]
    %v1390 = vld [vmem:[%s1377 + $0x60] sm:$0xff]
    %v1391 = vld [vmem:[%s1377 + $0x68] sm:$0xff]
    %v1392 = vld [vmem:[%s1377 + $0x70] sm:$0xff]
    %v1393 = vld [vmem:[%s1377 + $0x78] sm:$0xff]
    %v1394 = vld [vmem:[%s1377 + $0x80] sm:$0xff]
    %v1395 = vld [vmem:[%s1377 + $0x88] sm:$0xff]
    %v1396 = vld [vmem:[%s1377 + $0x90] sm:$0xff]
    %v1397 = vld [vmem:[%s1377 + $0x98] sm:$0xff]
    %v1398 = vld [vmem:[%s1377 + $0xa0] sm:$0xff]
    %v1399 = vld [vmem:[%s1377 + $0xa8] sm:$0xff]
    %v1400 = vld [vmem:[%s1377 + $0xb0] sm:$0xff]
    %v1401 = vld [vmem:[%s1377 + $0xb8] sm:$0xff]
    %v1403 = vsel %vm40, %v1353, 0
    %v1406 = vsel %vm40, %v1354, 0
    %v1409 = vsel %vm40, %v1355, 0
    %v1412 = vsel %vm40, %v1356, 0
    %1414 = vmatprep.subr.mxu0 0.0
    %1415 = vmatpush1.msra.mxu0 %v1378
    %1416 = vmatprep.subr.mxu0 0.0
    %1417 = vmatpush1.msra.mxu0 %v1379
    %1418 = vmatprep.subr.mxu0 0.0
    %1419 = vmatpush1.msra.mxu0 %v1380
    %1420 = vmatprep.subr.mxu0 0.0
    %1421 = vmatpush1.msra.mxu0 %v1381
    %1422 = vmatprep.subr.mxu0 0.0
    %1423 = vmatpush1.msra.mxu0 %v1382
    %1424 = vmatprep.subr.mxu0 0.0
    %1425 = vmatpush1.msra.mxu0 %v1383
    %1426 = vmatprep.subr.mxu0 0.0
    %1427 = vmatpush1.msra.mxu0 %v1384
    %1428 = vmatprep.subr.mxu0 0.0
    %1429 = vmatpush1.msra.mxu0 %v1385
    %1430 = vmatprep.subr.mxu0 0.0
    %1431 = vmatpush1.msra.mxu0 %v1386
    %1432 = vmatprep.subr.mxu0 0.0
    %1433 = vmatpush1.msra.mxu0 %v1387
    %1434 = vmatprep.subr.mxu0 0.0
    %1435 = vmatpush1.msra.mxu0 %v1388
    %1436 = vmatprep.subr.mxu0 0.0
    %1437 = vmatpush1.msra.mxu0 %v1389
    %1438 = vmatprep.subr.mxu0 0.0
    %1439 = vmatpush1.msra.mxu0 %v1390
    %1440 = vmatprep.subr.mxu0 0.0
    %1441 = vmatpush1.msra.mxu0 %v1391
    %1442 = vmatprep.subr.mxu0 0.0
    %1443 = vmatpush1.msra.mxu0 %v1392
    %1444 = vmatprep.subr.mxu0 0.0
    %1445 = vmatpush1.msra.mxu0 %v1393
    %1446 = vmatprep.subr.mxu0 0.0
    %1447 = vmatpush1.msra.mxu0 %v1394
    %1448 = vmatprep.subr.mxu0 0.0
    %1449 = vmatpush1.msra.mxu0 %v1395
    %1450 = vmatprep.subr.mxu0 0.0
    %1451 = vmatpush1.msra.mxu0 %v1396
    %1452 = vmatprep.subr.mxu0 0.0
    %1453 = vmatpush1.msra.mxu0 %v1397
    %1454 = vmatprep.subr.mxu0 0.0
    %1455 = vmatpush1.msra.mxu0 %v1398
    %1456 = vmatprep.subr.mxu0 0.0
    %1457 = vmatpush1.msra.mxu0 %v1399
    %1458 = vmatprep.subr.mxu0 0.0
    %1459 = vmatpush1.msra.mxu0 %v1400
    %1460 = vmatprep.subr.mxu0 0.0
    %1461 = vmatpush1.msra.mxu0 %v1401
    %1462 = vmatprep.subr.mxu0 0.0
    %1463 = vmatpush1.msra.mxu0 0.0
    %1464 = vmatprep.subr.mxu0 0.0
    %1465 = vmatpush1.msra.mxu0 0.0
    %1466 = vmatprep.subr.mxu0 0.0
    %1467 = vmatpush1.msra.mxu0 0.0
    %1468 = vmatprep.subr.mxu0 0.0
    %1469 = vmatpush1.msra.mxu0 0.0
    %1470 = vmatprep.subr.mxu0 0.0
    %1471 = vmatpush1.msra.mxu0 0.0
    %1472 = vmatprep.subr.mxu0 0.0
    %1473 = vmatpush1.msra.mxu0 0.0
    %1474 = vmatprep.subr.mxu0 0.0
    %1475 = vmatpush1.msra.mxu0 0.0
    %1476 = vmatprep.subr.mxu0 0.0
    %1477 = vmatpush1.msra.mxu0 0.0
    %1478 = vmatprep.mubr.f32.mxu0 %v1403
    %1479 = vmatmul.mubr.f32.gmra.mrb[0].mxu0 %v1373
    %v1480 = vpop.f32.mrb[0].mxu0
    %v1481 = vadd.f32 0.0, %v1480
    %v1482 = vpop.f32.mrb[0].mxu0
    %1483 = vmatprep.mubr.f32.mxu0 %v1406
    %1484 = vmatmul.mubr.f32.gmra.mrb[0].mxu0 %v1374
    %v1485 = vpop.f32.mrb[0].mxu0
    %v1486 = vadd.f32 0.0, %v1485
    %v1487 = vpop.f32.mrb[0].mxu0
    %1488 = vmatprep.mubr.f32.mxu0 %v1409
    %1489 = vmatmul.mubr.f32.gmra.mrb[0].mxu0 %v1375
    %v1490 = vpop.f32.mrb[0].mxu0
    %v1491 = vadd.f32 0.0, %v1490
    %v1492 = vpop.f32.mrb[0].mxu0
    %1493 = vmatprep.mubr.f32.mxu0 %v1412
    %1494 = vmatmul.mubr.f32.gmra.mrb[0].mxu0 %v1376
    %v1495 = vpop.f32.mrb[0].mxu0
    %v1496 = vadd.f32 0.0, %v1495
    %v1497 = vpop.f32.mrb[0].mxu0
    %1498 = vdwg.mxu0
    %v1499 = vmul.f32 %v1481, %v1481
    %v1500 = vmul.f32 %v1486, %v1486
    %v1501 = vmul.f32 %v1491, %v1491
    %v1502 = vmul.f32 %v1496, %v1496
    %v1504 = vsel %vm40, %v1481, 0
    %v1507 = vsel %vm40, %v1486, 0
    %v1510 = vsel %vm40, %v1491, 0
    %v1513 = vsel %vm40, %v1496, 0
    %v1516 = vsel %vm40, %v1499, 0
    %v1519 = vsel %vm40, %v1500, 0
    %v1522 = vsel %vm40, %v1501, 0
    %v1525 = vsel %vm40, %v1502, 0
    %1527 = vmatprep.subr.mxu0 0.0
    %1528 = vmatpush1.msra.mxu0 %v31
    %1529 = vmatprep.subr.mxu0 0.0
    %1530 = vmatpush1.msra.mxu0 %v32
    %1531 = vmatprep.subr.mxu0 0.0
    %1532 = vmatpush1.msra.mxu0 %v33
    %1533 = vmatprep.subr.mxu0 0.0
    %1534 = vmatpush1.msra.mxu0 %v34
    %1535 = vmatprep.subr.mxu0 0.0
    %1536 = vmatpush1.msra.mxu0 %v35
    %1537 = vmatprep.subr.mxu0 0.0
    %1538 = vmatpush1.msra.mxu0 %v36
    %1539 = vmatprep.subr.mxu0 0.0
    %1540 = vmatpush1.msra.mxu0 %v37
    %1541 = vmatprep.subr.mxu0 0.0
    %1542 = vmatpush1.msra.mxu0 %v38
    %1543 = vmatprep.subr.mxu0 0.0
    %1544 = vmatpush1.msra.mxu0 0.0
    %1545 = vmatprep.subr.mxu0 0.0
    %1546 = vmatpush1.msra.mxu0 0.0
    %1547 = vmatprep.subr.mxu0 0.0
    %1548 = vmatpush1.msra.mxu0 0.0
    %1549 = vmatprep.subr.mxu0 0.0
    %1550 = vmatpush1.msra.mxu0 0.0
    %1551 = vmatprep.subr.mxu0 0.0
    %1552 = vmatpush1.msra.mxu0 0.0
    %1553 = vmatprep.subr.mxu0 0.0
    %1554 = vmatpush1.msra.mxu0 0.0
    %1555 = vmatprep.subr.mxu0 0.0
    %1556 = vmatpush1.msra.mxu0 0.0
    %1557 = vmatprep.subr.mxu0 0.0
    %1558 = vmatpush1.msra.mxu0 0.0
    %1559 = vmatprep.subr.mxu0 0.0
    %1560 = vmatpush1.msra.mxu0 0.0
    %1561 = vmatprep.subr.mxu0 0.0
    %1562 = vmatpush1.msra.mxu0 0.0
    %1563 = vmatprep.subr.mxu0 0.0
    %1564 = vmatpush1.msra.mxu0 0.0
    %1565 = vmatprep.subr.mxu0 0.0
    %1566 = vmatpush1.msra.mxu0 0.0
    %1567 = vmatprep.subr.mxu0 0.0
    %1568 = vmatpush1.msra.mxu0 0.0
    %1569 = vmatprep.subr.mxu0 0.0
    %1570 = vmatpush1.msra.mxu0 0.0
    %1571 = vmatprep.subr.mxu0 0.0
    %1572 = vmatpush1.msra.mxu0 0.0
    %1573 = vmatprep.subr.mxu0 0.0
    %1574 = vmatpush1.msra.mxu0 0.0
    %1575 = vmatprep.subr.mxu0 0.0
    %1576 = vmatpush1.msra.mxu0 0.0
    %1577 = vmatprep.subr.mxu0 0.0
    %1578 = vmatpush1.msra.mxu0 0.0
    %1579 = vmatprep.subr.mxu0 0.0
    %1580 = vmatpush1.msra.mxu0 0.0
    %1581 = vmatprep.subr.mxu0 0.0
    %1582 = vmatpush1.msra.mxu0 0.0
    %1583 = vmatprep.subr.mxu0 0.0
    %1584 = vmatpush1.msra.mxu0 0.0
    %1585 = vmatprep.subr.mxu0 0.0
    %1586 = vmatpush1.msra.mxu0 0.0
    %1587 = vmatprep.subr.mxu0 0.0
    %1588 = vmatpush1.msra.mxu0 0.0
    %1589 = vmatprep.subr.mxu0 0.0
    %1590 = vmatpush1.msra.mxu0 0.0
    %1591 = vmatprep.mubr.f32.mxu0 0.0
    %1592 = vmatmul.mubr.f32.gmra.mrb[0].mxu0 %v1504
    %v1593 = vpop.f32.mrb[0].mxu0
    %v1594 = vadd.f32 0.0, %v1593
    %v1595 = vpop.f32.mrb[0].mxu0
    %1596 = vmatprep.mubr.f32.mxu0 0.0
    %1597 = vmatmul.mubr.f32.gmra.mrb[0].mxu0 %v1507
    %v1598 = vpop.f32.mrb[0].mxu0
    %v1599 = vadd.f32 0.0, %v1598
    %v1600 = vpop.f32.mrb[0].mxu0
    %1601 = vmatprep.mubr.f32.mxu0 0.0
    %1602 = vmatmul.mubr.f32.gmra.mrb[0].mxu0 %v1510
    %v1603 = vpop.f32.mrb[0].mxu0
    %v1604 = vadd.f32 0.0, %v1603
    %v1605 = vpop.f32.mrb[0].mxu0
    %1606 = vmatprep.mubr.f32.mxu0 0.0
    %1607 = vmatmul.mubr.f32.gmra.mrb[0].mxu0 %v1513
    %v1608 = vpop.f32.mrb[0].mxu0
    %v1609 = vadd.f32 0.0, %v1608
    %v1610 = vpop.f32.mrb[0].mxu0
    %1611 = vmatprep.mubr.f32.mxu0 0.0
    %1612 = vmatmul.mubr.f32.gmra.mrb[0].mxu0 %v1516
    %v1613 = vpop.f32.mrb[0].mxu0
    %v1614 = vadd.f32 0.0, %v1613
    %v1615 = vpop.f32.mrb[0].mxu0
    %1616 = vmatprep.mubr.f32.mxu0 0.0
    %1617 = vmatmul.mubr.f32.gmra.mrb[0].mxu0 %v1519
    %v1618 = vpop.f32.mrb[0].mxu0
    %v1619 = vadd.f32 0.0, %v1618
    %v1620 = vpop.f32.mrb[0].mxu0
    %1621 = vmatprep.mubr.f32.mxu0 0.0
    %1622 = vmatmul.mubr.f32.gmra.mrb[0].mxu0 %v1522
    %v1623 = vpop.f32.mrb[0].mxu0
    %v1624 = vadd.f32 0.0, %v1623
    %v1625 = vpop.f32.mrb[0].mxu0
    %1626 = vmatprep.mubr.f32.mxu0 0.0
    %1627 = vmatmul.mubr.f32.gmra.mrb[0].mxu0 %v1525
    %v1628 = vpop.f32.mrb[0].mxu0
    %v1629 = vadd.f32 0.0, %v1628
    %v1630 = vpop.f32.mrb[0].mxu0
    %1631 = vdwg.mxu0
    %v1632 = vsel %vm338, %v1594, 0.0
    %v1633 = vsel %vm338, %v1599, 0.0
    %v1634 = vadd.f32 %v1632, %v1633
    %v1635 = vsel %vm338, %v1604, 0.0
    %v1636 = vadd.f32 %v1634, %v1635
    %v1637 = vsel %vm338, %v1609, 0.0
    %v1638 = vadd.f32 %v1636, %v1637
    %v1639 = vrot.slane %v1638, 4
    %v1640 = vadd.f32 %v1638, %v1639
    %v1641 = vrot.slane %v1640, 2
    %v1642 = vadd.f32 %v1640, %v1641
    %v1643 = vrot.slane %v1642, 1
    %v1644 = vadd.f32 %v1642, %v1643
    %v1645 = vmul.f32 %v1644, 0.001953125
    %v1646 = vsel %vm338, %v1614, 0.0
    %v1647 = vsel %vm338, %v1619, 0.0
    %v1648 = vadd.f32 %v1646, %v1647
    %v1649 = vsel %vm338, %v1624, 0.0
    %v1650 = vadd.f32 %v1648, %v1649
    %v1651 = vsel %vm338, %v1629, 0.0
    %v1652 = vadd.f32 %v1650, %v1651
    %v1653 = vrot.slane %v1652, 4
    %v1654 = vadd.f32 %v1652, %v1653
    %v1655 = vrot.slane %v1654, 2
    %v1656 = vadd.f32 %v1654, %v1655
    %v1657 = vrot.slane %v1656, 1
    %v1658 = vadd.f32 %v1656, %v1657
    %v1659 = vmul.f32 %v1658, 0.001953125
    %v1660 = vmul.f32 %v1645, %v1645
    %v1661 = vsub.f32 %v1659, %v1660
    %s1662 = scalar_lea.vmem %s2, 3
    %v1663 = vld [vmem:[%s1662] sm:$0x1]
    %v1664 = vadd.f32 %v1661, 1e-05
    %v1665 = vrsqrt.pop %v1664
    %v1666 = vmul.f32 %v1663, %v1665
    %s1667 = scalar_lea.vmem %s3, 3
    %v1668 = vld [vmem:[%s1667] sm:$0x1]
    %v1669 = vmul.f32 %v1645, %v1666
    %v1670 = vsub.f32 %v1668, %v1669
    %v1672 = vlaneseq
    %v1673 = vshrl.u32 %v1672, 7
    %v1674 = vsub.s32 0, %v1673
    %v1675 = vrot.slane %v1670, %v1674
    %v1677 = vsel %vm382, %v1666, %v1675
    %v1679 = vsel %vm338, %v1677, 0
    %1681 = vmatprep.subr.mxu0 0.0
    %1682 = vmatpush1.msra.mxu0 %v389
    %1683 = vmatprep.subr.mxu0 0.0
    %1684 = vmatpush1.msra.mxu0 0.0
    %1685 = vmatprep.subr.mxu0 0.0
    %1686 = vmatpush1.msra.mxu0 0.0
    %1687 = vmatprep.subr.mxu0 0.0
    %1688 = vmatpush1.msra.mxu0 0.0
    %1689 = vmatprep.subr.mxu0 0.0
    %1690 = vmatpush1.msra.mxu0 0.0
    %1691 = vmatprep.subr.mxu0 0.0
    %1692 = vmatpush1.msra.mxu0 0.0
    %1693 = vmatprep.subr.mxu0 0.0
    %1694 = vmatpush1.msra.mxu0 0.0
    %1695 = vmatprep.subr.mxu0 0.0
    %1696 = vmatpush1.msra.mxu0 0.0
    %1697 = vmatprep.subr.mxu0 0.0
    %1698 = vmatpush1.msra.mxu0 0.0
    %1699 = vmatprep.subr.mxu0 0.0
    %1700 = vmatpush1.msra.mxu0 0.0
    %1701 = vmatprep.subr.mxu0 0.0
    %1702 = vmatpush1.msra.mxu0 0.0
    %1703 = vmatprep.subr.mxu0 0.0
    %1704 = vmatpush1.msra.mxu0 0.0
    %1705 = vmatprep.subr.mxu0 0.0
    %1706 = vmatpush1.msra.mxu0 0.0
    %1707 = vmatprep.subr.mxu0 0.0
    %1708 = vmatpush1.msra.mxu0 0.0
    %1709 = vmatprep.subr.mxu0 0.0
    %1710 = vmatpush1.msra.mxu0 0.0
    %1711 = vmatprep.subr.mxu0 0.0
    %1712 = vmatpush1.msra.mxu0 0.0
    %1713 = vmatprep.subr.mxu0 0.0
    %1714 = vmatpush1.msra.mxu0 0.0
    %1715 = vmatprep.subr.mxu0 0.0
    %1716 = vmatpush1.msra.mxu0 0.0
    %1717 = vmatprep.subr.mxu0 0.0
    %1718 = vmatpush1.msra.mxu0 0.0
    %1719 = vmatprep.subr.mxu0 0.0
    %1720 = vmatpush1.msra.mxu0 0.0
    %1721 = vmatprep.subr.mxu0 0.0
    %1722 = vmatpush1.msra.mxu0 0.0
    %1723 = vmatprep.subr.mxu0 0.0
    %1724 = vmatpush1.msra.mxu0 0.0
    %1725 = vmatprep.subr.mxu0 0.0
    %1726 = vmatpush1.msra.mxu0 0.0
    %1727 = vmatprep.subr.mxu0 0.0
    %1728 = vmatpush1.msra.mxu0 0.0
    %1729 = vmatprep.subr.mxu0 0.0
    %1730 = vmatpush1.msra.mxu0 0.0
    %1731 = vmatprep.subr.mxu0 0.0
    %1732 = vmatpush1.msra.mxu0 0.0
    %1733 = vmatprep.subr.mxu0 0.0
    %1734 = vmatpush1.msra.mxu0 0.0
    %1735 = vmatprep.subr.mxu0 0.0
    %1736 = vmatpush1.msra.mxu0 0.0
    %1737 = vmatprep.subr.mxu0 0.0
    %1738 = vmatpush1.msra.mxu0 0.0
    %1739 = vmatprep.subr.mxu0 0.0
    %1740 = vmatpush1.msra.mxu0 0.0
    %1741 = vmatprep.subr.mxu0 0.0
    %1742 = vmatpush1.msra.mxu0 0.0
    %1743 = vmatprep.subr.mxu0 0.0
    %1744 = vmatpush1.msra.mxu0 0.0
    %1745 = vmatprep.mubr.f32.mxu0 0.0
    %1746 = vmatmul.mubr.f32.gmra.mrb[0].mxu0 %v1679
    %v1747 = vpop.f32.mrb[0].mxu0
    %v1748 = vadd.f32 0.0, %v1747
    %v1749 = vpop.f32.mrb[0].mxu0
    %1750 = vdwg.mxu0
    %v1751 = vlaneseq
    %v1752 = vshrl.u32 %v1751, 7
    %v1753 = vsub.s32 0, %v1752
    %v1754 = vrot.slane %v1748, %v1753
    %v1755 = vmul.f32 %v1481, %v1754
    %v1756 = vmul.f32 %v1486, %v1754
    %v1757 = vmul.f32 %v1491, %v1754
    %v1758 = vmul.f32 %v1496, %v1754
    %v1759 = vlaneseq
    %v1760 = vshrl.u32 %v1759, 7
    %v1761 = vsub.s32 1, %v1760
    %v1762 = vrot.slane %v1748, %v1761
    %v1763 = vadd.f32 %v1755, %v1762
    %v1764 = vadd.f32 %v1756, %v1762
    %v1765 = vadd.f32 %v1757, %v1762
    %v1766 = vadd.f32 %v1758, %v1762
    %v1767 = vmax.f32 %v1763, 0.0
    %v1768 = vmax.f32 %v1764, 0.0
    %v1769 = vmax.f32 %v1765, 0.0
    %v1770 = vmax.f32 %v1766, 0.0
    %v1771 = vadd.f32 %v1767, %v27
    %v1772 = vadd.f32 %v1768, %v28
    %v1773 = vadd.f32 %v1769, %v29
    %v1774 = vadd.f32 %v1770, %v30
    %v1775 = vld [vmem:[%s6] sm:$0xff]
    %v1776 = vld [vmem:[%s6 + $0x8] sm:$0xff]
    %v1777 = vld [vmem:[%s6 + $0x10] sm:$0xff]
    %v1778 = vld [vmem:[%s6 + $0x18] sm:$0xff]
    %v1779 = vld [vmem:[%s6 + $0x20] sm:$0xff]
    %v1780 = vld [vmem:[%s6 + $0x28] sm:$0xff]
    %v1781 = vld [vmem:[%s6 + $0x30] sm:$0xff]
    %v1782 = vld [vmem:[%s6 + $0x38] sm:$0xff]
    %v1784 = vsel %vm40, %v1771, 0
    %v1787 = vsel %vm40, %v1772, 0
    %v1790 = vsel %vm40, %v1773, 0
    %v1793 = vsel %vm40, %v1774, 0
    %1795 = vmatprep.subr.mxu0 0.0
    %1796 = vmatpush1.msra.mxu0 %v1775
    %1797 = vmatprep.subr.mxu0 0.0
    %1798 = vmatpush1.msra.mxu0 %v1776
    %1799 = vmatprep.subr.mxu0 0.0
    %1800 = vmatpush1.msra.mxu0 %v1777
    %1801 = vmatprep.subr.mxu0 0.0
    %1802 = vmatpush1.msra.mxu0 %v1778
    %1803 = vmatprep.subr.mxu0 0.0
    %1804 = vmatpush1.msra.mxu0 %v1779
    %1805 = vmatprep.subr.mxu0 0.0
    %1806 = vmatpush1.msra.mxu0 %v1780
    %1807 = vmatprep.subr.mxu0 0.0
    %1808 = vmatpush1.msra.mxu0 %v1781
    %1809 = vmatprep.subr.mxu0 0.0
    %1810 = vmatpush1.msra.mxu0 %v1782
    %1811 = vmatprep.subr.mxu0 0.0
    %1812 = vmatpush1.msra.mxu0 0.0
    %1813 = vmatprep.subr.mxu0 0.0
    %1814 = vmatpush1.msra.mxu0 0.0
    %1815 = vmatprep.subr.mxu0 0.0
    %1816 = vmatpush1.msra.mxu0 0.0
    %1817 = vmatprep.subr.mxu0 0.0
    %1818 = vmatpush1.msra.mxu0 0.0
    %1819 = vmatprep.subr.mxu0 0.0
    %1820 = vmatpush1.msra.mxu0 0.0
    %1821 = vmatprep.subr.mxu0 0.0
    %1822 = vmatpush1.msra.mxu0 0.0
    %1823 = vmatprep.subr.mxu0 0.0
    %1824 = vmatpush1.msra.mxu0 0.0
    %1825 = vmatprep.subr.mxu0 0.0
    %1826 = vmatpush1.msra.mxu0 0.0
    %1827 = vmatprep.subr.mxu0 0.0
    %1828 = vmatpush1.msra.mxu0 0.0
    %1829 = vmatprep.subr.mxu0 0.0
    %1830 = vmatpush1.msra.mxu0 0.0
    %1831 = vmatprep.subr.mxu0 0.0
    %1832 = vmatpush1.msra.mxu0 0.0
    %1833 = vmatprep.subr.mxu0 0.0
    %1834 = vmatpush1.msra.mxu0 0.0
    %1835 = vmatprep.subr.mxu0 0.0
    %1836 = vmatpush1.msra.mxu0 0.0
    %1837 = vmatprep.subr.mxu0 0.0
    %1838 = vmatpush1.msra.mxu0 0.0
    %1839 = vmatprep.subr.mxu0 0.0
    %1840 = vmatpush1.msra.mxu0 0.0
    %1841 = vmatprep.subr.mxu0 0.0
    %1842 = vmatpush1.msra.mxu0 0.0
    %1843 = vmatprep.subr.mxu0 0.0
    %1844 = vmatpush1.msra.mxu0 0.0
    %1845 = vmatprep.subr.mxu0 0.0
    %1846 = vmatpush1.msra.mxu0 0.0
    %1847 = vmatprep.subr.mxu0 0.0
    %1848 = vmatpush1.msra.mxu0 0.0
    %1849 = vmatprep.subr.mxu0 0.0
    %1850 = vmatpush1.msra.mxu0 0.0
    %1851 = vmatprep.subr.mxu0 0.0
    %1852 = vmatpush1.msra.mxu0 0.0
    %1853 = vmatprep.subr.mxu0 0.0
    %1854 = vmatpush1.msra.mxu0 0.0
    %1855 = vmatprep.subr.mxu0 0.0
    %1856 = vmatpush1.msra.mxu0 0.0
    %1857 = vmatprep.subr.mxu0 0.0
    %1858 = vmatpush1.msra.mxu0 0.0
    %1859 = vmatprep.mubr.f32.mxu0 0.0
    %1860 = vmatmul.mubr.f32.gmra.mrb[0].mxu0 %v1784
    %v1861 = vpop.f32.mrb[0].mxu0
    %v1862 = vadd.f32 0.0, %v1861
    %v1863 = vpop.f32.mrb[0].mxu0
    %1864 = vmatprep.mubr.f32.mxu0 0.0
    %1865 = vmatmul.mubr.f32.gmra.mrb[0].mxu0 %v1787
    %v1866 = vpop.f32.mrb[0].mxu0
    %v1867 = vadd.f32 0.0, %v1866
    %v1868 = vpop.f32.mrb[0].mxu0
    %1869 = vmatprep.mubr.f32.mxu0 0.0
    %1870 = vmatmul.mubr.f32.gmra.mrb[0].mxu0 %v1790
    %v1871 = vpop.f32.mrb[0].mxu0
    %v1872 = vadd.f32 0.0, %v1871
    %v1873 = vpop.f32.mrb[0].mxu0
    %1874 = vmatprep.mubr.f32.mxu0 0.0
    %1875 = vmatmul.mubr.f32.gmra.mrb[0].mxu0 %v1793
    %v1876 = vpop.f32.mrb[0].mxu0
    %v1877 = vadd.f32 0.0, %v1876
    %v1878 = vpop.f32.mrb[0].mxu0
    %1879 = vdwg.mxu0
    %v1880 = vxor.u32 %v1862, 2147483648
    %v1881 = vxor.u32 %v1867, 2147483648
    %v1882 = vxor.u32 %v1872, 2147483648
    %v1883 = vxor.u32 %v1877, 2147483648
    %v1884 = vmul.f32 %v1880, 1.442695
    %v1885 = vpow.pop %v1884
    %v1886 = vmul.f32 %v1881, 1.442695
    %v1887 = vpow.pop %v1886
    %v1888 = vmul.f32 %v1882, 1.442695
    %v1889 = vpow.pop %v1888
    %v1890 = vmul.f32 %v1883, 1.442695
    %v1891 = vpow.pop %v1890
    %v1892 = vadd.f32 %v1885, 1.0
    %v1893 = vadd.f32 %v1887, 1.0
    %v1894 = vadd.f32 %v1889, 1.0
    %v1895 = vadd.f32 %v1891, 1.0
    %v1896 = vrcp.pop %v1892
    %v1897 = vmul.f32 1.0, %v1896
    %v1898 = vrcp.pop %v1893
    %v1899 = vmul.f32 1.0, %v1898
    %v1900 = vrcp.pop %v1894
    %v1901 = vmul.f32 1.0, %v1900
    %v1902 = vrcp.pop %v1895
    %v1903 = vmul.f32 1.0, %v1902
    %vm1904 = vcmask 130048
    %1905 = vst.msk [vmem:[#allocation3] sm:$0xff] %vm1904, %v1897
    %1906 = vst.msk [vmem:[#allocation3 + $0x8] sm:$0xff] %vm1904, %v1899
    %1907 = vst.msk [vmem:[#allocation3 + $0x10] sm:$0xff] %vm1904, %v1901
    %1908 = vst.msk [vmem:[#allocation3 + $0x18] sm:$0xff] %vm1904, %v1903
    // Predicated region
    $region30: #{lidc_i2l_atter_forward.1} parent=1 // pred_check
      _
    $region31: #{lidc_i2l_atter_forward.1} parent=1 // pred_check_branch
      %1910 = sbr.rel (0) target = $region33
    $region32: #{lidc_i2l_atter_forward.1} parent=1 // pred_region
      %s1912 = ssub.s32 512, 512
      %1913 = vsyncadd [#allocation4], %s1912
      %s1914 = sshll.u32 [#allocation3], 4
      %s1915 = int_to_ptr.vmem [resolvable:$true] %s1914
      %1920 = dma.vmem_to_hbm [thread:$0]  %s1915, 512, %s7, [#allocation4], 128, 128, 8
    $region33: #{lidc_i2l_atter_forward.1} parent=1 // pred_fallthru
      _
    // Predicated region
    $region34: #{lidc_i2l_atter_forward.1} parent=1 // pred_check
      _
    $region35: #{lidc_i2l_atter_forward.1} parent=1 // pred_check_branch
      %1922 = sbr.rel (0) target = $region37
    $region36: #{lidc_i2l_atter_forward.1} parent=1 // pred_region
      %1923 = dma.done [#allocation4], 512
    $region37: #{lidc_i2l_atter_forward.1} parent=1 // pred_fallthru
      _
    %1924 = vsyncpa [#allocation4], 1

</llo_original>
